<compile_context>
chip_gen: v6e
topology: v6e:2x2x1
jax: 0.10.0
libtpu: 0.0.40
codegen_flags: <defaults>
</compile_context>

<pallas_src>
import functools
import math

import jax
import jax.numpy as jnp
import numpy as np
from jax.experimental import pallas as pl
from jax.experimental.pallas import tpu as pltpu

C_IN = 3
K = 3
POOL = 4
HIDDEN = 32
OUT_PAD = 128  # lane-dense padded output width


def _round_up(v, m):
    return -(-v // m) * m


def _pool_bounds(idx, size, out_size):
    start = (idx * size) // out_size
    end = math.ceil((idx + 1) * size / out_size)
    return start, end


@functools.lru_cache(maxsize=None)
def _conv_tap_selector(H, W):
    """Static (K*K, H*W, P_pad) 0/1 selector: tap t scatters input pixel -> conv col."""
    Hc, Wc = H - K + 1, W - K + 1
    P_raw = Hc * Wc
    P_pad = _round_up(P_raw, 128)
    sel = np.zeros((K * K, H * W, P_pad), np.float32)
    ii, jj = np.meshgrid(np.arange(Hc), np.arange(Wc), indexing="ij")
    cols = (ii * Wc + jj).reshape(-1)
    for dh in range(K):
        for dw in range(K):
            rows = ((ii + dh) * W + (jj + dw)).reshape(-1)
            sel[dh * K + dw, rows, cols] = 1.0
    return sel


@functools.lru_cache(maxsize=None)
def _pool_selector(Hc, Wc):
    """Static (P_pad, 16) adaptive-avg-pool matrix (1/cnt baked in)."""
    P_raw = Hc * Wc
    P_pad = _round_up(P_raw, 128)
    pool = np.zeros((P_pad, POOL * POOL), np.float32)
    for pi in range(POOL):
        hs, he = _pool_bounds(pi, Hc, POOL)
        for pj in range(POOL):
            ws, we = _pool_bounds(pj, Wc, POOL)
            cnt = float((he - hs) * (we - ws))
            ri, rj = np.meshgrid(np.arange(hs, he), np.arange(ws, we),
                                 indexing="ij")
            rows = (ri * Wc + rj).reshape(-1)
            pool[rows, pi * POOL + pj] = 1.0 / cnt
    # Padded conv-output columns must map to exactly-zero pool rows so the
    # ReLU'd bias in those columns never reaches the output.
    assert not pool[P_raw:].any()
    return pool


def _forward_kernel(x_ref, cb_ref, cmat_ref, wf_ref, lb_ref, o_ref):
    # x_ref:    (Nb, C*H*W)    VMEM bf16  flattened input images
    # cb_ref:   (1,)           SMEM f32   conv bias (scalar)
    # cmat_ref: (C*H*W, P_pad) VMEM bf16  dense conv lowering matrix (resident)
    # wf_ref:   (P_pad, 128)   VMEM bf16  fused pool+linear weight (resident)
    # lb_ref:   (1, 128)       VMEM f32   padded linear bias (resident)
    # o_ref:    (Nb, 128)      VMEM f32
    h = jnp.dot(x_ref[...], cmat_ref[...],
                preferred_element_type=jnp.float32) + cb_ref[0]
    r = jnp.maximum(h, 0.0).astype(jnp.bfloat16)
    o_ref[...] = jnp.dot(r, wf_ref[...],
                         preferred_element_type=jnp.float32) + lb_ref[...]


def module_forward(x, conv_w, conv_b, lin_w, lin_b):
    """x: (N, 3, H, W) f32.  Returns (N, 32) f32.

    conv_w: (1, 3, 3, 3)  conv_b: (1,)
    lin_w:  (32, 16)      lin_b:  (32,)   (PyTorch nn.Linear layout)
    """
    N, C, H, W = x.shape
    assert C == C_IN
    Hc, Wc = H - K + 1, W - K + 1
    P_raw = Hc * Wc
    P_pad = _round_up(P_raw, 128)
    CHW = C_IN * H * W

    # --- Dense conv lowering matrix: one einsum over 27 taps, no scatters ---
    sel = jnp.asarray(_conv_tap_selector(H, W))               # (9, H*W, P_pad)
    taps = conv_w.reshape(C_IN, K * K).astype(jnp.float32)    # (3, 9)
    cmat = jnp.einsum("ct,tpq->cpq", taps, sel).reshape(CHW, P_pad)
    cmat = cmat.astype(jnp.bfloat16)

    # --- Fused AdaptiveAvgPool2d(4) + Linear, padded to 128 output lanes ---
    pool = jnp.asarray(_pool_selector(Hc, Wc))                # (P_pad, 16)
    w_fused = pool @ jnp.transpose(lin_w.astype(jnp.float32))  # (P_pad, 32)
    w_fused = jnp.pad(w_fused, ((0, 0), (0, OUT_PAD - HIDDEN))).astype(jnp.bfloat16)
    lb = jnp.pad(lin_b.reshape(1, HIDDEN).astype(jnp.float32),
                 ((0, 0), (0, OUT_PAD - HIDDEN)))             # (1, 128) f32
    cb = conv_b.reshape(1).astype(jnp.float32)                # (1,) SMEM scalar

    # --- Batch blocking: big MXU-filling blocks, >=2 grid steps for v7x ---
    N_round = _round_up(N, 16)                                # bf16 sublane packing
    if N_round <= 16:
        Nb = N_round                                          # tiny batch: one step
    elif N_round <= 512:
        Nb = _round_up(-(-N_round // 2), 16)                  # 2 steps -> both v7x TCs
    else:
        Nb = 256
    N_pad = _round_up(N, Nb)
    grid = (N_pad // Nb,)

    x_flat = x.astype(jnp.bfloat16).reshape(N, CHW)
    if N_pad != N:
        x_flat = jnp.pad(x_flat, ((0, N_pad - N), (0, 0)))

    cost = pl.CostEstimate(
        flops=2 * N_pad * (CHW * P_pad + P_pad * OUT_PAD),
        transcendentals=0,
        bytes_accessed=(2 * (N_pad * CHW + CHW * P_pad + P_pad * OUT_PAD)
                        + 4 * (N_pad * OUT_PAD + OUT_PAD + 1)),
    )

    def _run(single_buffer):
        resident = {}
        if single_buffer:
            # Constant index_map -> fetched once; no need to double-buffer.
            resident = dict(pipeline_mode=pl.Buffered(buffer_count=1))
        in_specs = [
            pl.BlockSpec((Nb, CHW), lambda n: (n, 0)),
            pl.BlockSpec(memory_space=pltpu.MemorySpace.SMEM),
            pl.BlockSpec((CHW, P_pad), lambda n: (0, 0), **resident),
            pl.BlockSpec((P_pad, OUT_PAD), lambda n: (0, 0), **resident),
            pl.BlockSpec((1, OUT_PAD), lambda n: (0, 0), **resident),
        ]
        out_spec = pl.BlockSpec((Nb, OUT_PAD), lambda n: (n, 0))
        return pl.pallas_call(
            _forward_kernel,
            out_shape=jax.ShapeDtypeStruct((N_pad, OUT_PAD), jnp.float32),
            grid_spec=pltpu.PrefetchScalarGridSpec(
                num_scalar_prefetch=0,
                grid=grid,
                in_specs=in_specs,
                out_specs=out_spec,
            ),
            compiler_params=pltpu.CompilerParams(
                dimension_semantics=("parallel",)),
            cost_estimate=cost,
        )(x_flat, cb, cmat, w_fused, lb)

    try:
        out = _run(True)
    except Exception:
        # pl.Buffered(1) not supported on this JAX version -> default buffering.
        out = _run(False)

    return out[:N, :HIDDEN]


def _reference_forward(x, conv_w, conv_b, lin_w, lin_b):
    """Pure-JAX f32 reference mirroring the PyTorch module semantics."""
    N, C, H, W = x.shape
    Hc, Wc = H - K + 1, W - K + 1
    conv = jnp.zeros((N, Hc, Wc), jnp.float32)
    for c in range(C_IN):
        for dh in range(K):
            for dw in range(K):
                conv = conv + x[:, c, dh:dh + Hc, dw:dw + Wc] * conv_w[0, c, dh, dw]
    conv = conv + conv_b[0]
    r = jnp.maximum(conv, 0.0)
    pooled = []
    for i in range(POOL):
        hs, he = _pool_bounds(i, Hc, POOL)
        for j in range(POOL):
            ws, we = _pool_bounds(j, Wc, POOL)
            pooled.append(jnp.mean(r[:, hs:he, ws:we], axis=(1, 2)))
    p = jnp.stack(pooled, axis=1)                 # (N, 16), row-major (i, j) order
    return p @ jnp.transpose(lin_w) + lin_b       # (N, 32)


if __name__ == "__main__":
    key = jax.random.PRNGKey(0)
    k_x, k_cw, k_cb, k_lw, k_lb = jax.random.split(key, 5)

    N, H, W = 2, 16, 16
    x = jax.random.normal(k_x, (N, C_IN, H, W), dtype=jnp.float32)

    # Deterministic parameter init (shapes match the PyTorch module).
    conv_w = jax.random.normal(k_cw, (1, C_IN, K, K), dtype=jnp.float32) * 0.2
    conv_b = jax.random.normal(k_cb, (1,), dtype=jnp.float32) * 0.1
    lin_w = jax.random.normal(k_lw, (HIDDEN, POOL * POOL), dtype=jnp.float32) * 0.2
    lin_b = jax.random.normal(k_lb, (HIDDEN,), dtype=jnp.float32) * 0.1

    out = module_forward(x, conv_w, conv_b, lin_w, lin_b)
    out = jax.block_until_ready(out)

    ref = _reference_forward(x, conv_w, conv_b, lin_w, lin_b)
    assert out.shape == (N, HIDDEN), out.shape
    # bf16 operands with f32 accumulation -> relaxed tolerance.
    assert jnp.allclose(out, ref, atol=5e-2, rtol=5e-2), (
        float(jnp.max(jnp.abs(out - ref))))

    print("KERNEL_OK")
</pallas_src>

<mosaic_0001>
module attributes {stable_mosaic.version = 11 : i64} {
  func.func @_forward_kernel(%arg0: i32, %arg1: memref<16x768xbf16, #tpu.memory_space<vmem>>, %arg2: memref<1xf32, #tpu.memory_space<smem>>, %arg3: memref<768x256xbf16, #tpu.memory_space<vmem>>, %arg4: memref<256x128xbf16, #tpu.memory_space<vmem>>, %arg5: memref<1x128xf32, #tpu.memory_space<vmem>>, %arg6: memref<16x128xf32, #tpu.memory_space<vmem>>) attributes {dimension_semantics = [#tpu.dimension_semantics<parallel>], iteration_bounds = array<i64: 1>, scalar_prefetch = 0 : i64, scratch_operands = 0 : i64, tpu.core_type = #tpu.core_type<tc>, window_params = [{transform_indices = @transform_0, window_bounds = array<i64: 16, 768>}, {transform_indices = @transform_1, window_bounds = array<i64: 1>}, {pipeline_mode = #tpu.pipeline_mode<synchronous>, transform_indices = @transform_2, window_bounds = array<i64: 768, 256>}, {pipeline_mode = #tpu.pipeline_mode<synchronous>, transform_indices = @transform_3, window_bounds = array<i64: 256, 128>}, {pipeline_mode = #tpu.pipeline_mode<synchronous>, transform_indices = @transform_4, window_bounds = array<i64: 1, 128>}, {transform_indices = @transform_5, window_bounds = array<i64: 16, 128>}]} {
    %c0 = arith.constant 0 : index
    %c0_0 = arith.constant 0 : index
    %0 = vector.load %arg1[%c0, %c0_0] : memref<16x768xbf16, #tpu.memory_space<vmem>>, vector<16x768xbf16>
    %c0_1 = arith.constant 0 : index
    %c0_2 = arith.constant 0 : index
    %1 = vector.load %arg3[%c0_1, %c0_2] : memref<768x256xbf16, #tpu.memory_space<vmem>>, vector<768x256xbf16>
    %cst = arith.constant dense<0.000000e+00> : vector<16x256xf32>
    %2 = tpu.matmul %0, %1, %cst {dimension_numbers = #tpu.dot_dimension_numbers<[1], [0], [0], [1], [0, 0, 1, 1], [], []>} : vector<16x768xbf16>, vector<768x256xbf16>, vector<16x256xf32> -> vector<16x256xf32>
    %c0_3 = arith.constant 0 : index
    %3 = memref.load %arg2[%c0_3] : memref<1xf32, #tpu.memory_space<smem>>
    %4 = vector.broadcast %3 : f32 to vector<16x256xf32>
    %5 = arith.addf %2, %4 : vector<16x256xf32>
    %cst_4 = arith.constant 0.000000e+00 : f32
    %6 = vector.broadcast %cst_4 : f32 to vector<16x256xf32>
    %7 = arith.maximumf %5, %6 : vector<16x256xf32>
    %8 = arith.truncf %7 : vector<16x256xf32> to vector<16x256xbf16>
    %c0_5 = arith.constant 0 : index
    %c0_6 = arith.constant 0 : index
    %9 = vector.load %arg4[%c0_5, %c0_6] : memref<256x128xbf16, #tpu.memory_space<vmem>>, vector<256x128xbf16>
    %cst_7 = arith.constant dense<0.000000e+00> : vector<16x128xf32>
    %10 = tpu.matmul %8, %9, %cst_7 {dimension_numbers = #tpu.dot_dimension_numbers<[1], [0], [0], [1], [0, 0, 1, 1], [], []>} : vector<16x256xbf16>, vector<256x128xbf16>, vector<16x128xf32> -> vector<16x128xf32>
    %c0_8 = arith.constant 0 : index
    %c0_9 = arith.constant 0 : index
    %11 = vector.load %arg5[%c0_8, %c0_9] : memref<1x128xf32, #tpu.memory_space<vmem>>, vector<1x128xf32>
    %12 = vector.broadcast %11 : vector<1x128xf32> to vector<16x128xf32>
    %13 = arith.addf %10, %12 : vector<16x128xf32>
    %c0_10 = arith.constant 0 : index
    %c0_11 = arith.constant 0 : index
    %14 = vector.load %arg6[%c0_10, %c0_11] : memref<16x128xf32, #tpu.memory_space<vmem>>, vector<16x128xf32>
    tpu.vector_store %arg6[%c0_10, %c0_11], %13 {strides = array<i32>} : memref<16x128xf32, #tpu.memory_space<vmem>>, vector<16x128xf32>,
    return
  }
  func.func @transform_0(%arg0: i32) -> (i32, i32) {
    %c0_i32 = arith.constant 0 : i32
    %c0_i32_0 = arith.constant 0 : i32
    return %arg0, %c0_i32 : i32, i32
  }
  func.func @transform_1(%arg0: i32) -> i32 {
    %c0_i32 = arith.constant 0 : i32
    %c0_i32_0 = arith.constant 0 : i32
    return %c0_i32 : i32
  }
  func.func @transform_2(%arg0: i32) -> (i32, i32) {
    %c0_i32 = arith.constant 0 : i32
    %c0_i32_0 = arith.constant 0 : i32
    %c0_i32_1 = arith.constant 0 : i32
    return %c0_i32, %c0_i32_0 : i32, i32
  }
  func.func @transform_3(%arg0: i32) -> (i32, i32) {
    %c0_i32 = arith.constant 0 : i32
    %c0_i32_0 = arith.constant 0 : i32
    %c0_i32_1 = arith.constant 0 : i32
    return %c0_i32, %c0_i32_0 : i32, i32
  }
  func.func @transform_4(%arg0: i32) -> (i32, i32) {
    %c0_i32 = arith.constant 0 : i32
    %c0_i32_0 = arith.constant 0 : i32
    %c0_i32_1 = arith.constant 0 : i32
    return %c0_i32, %c0_i32_0 : i32, i32
  }
  func.func @transform_5(%arg0: i32) -> (i32, i32) {
    %c0_i32 = arith.constant 0 : i32
    %c0_i32_0 = arith.constant 0 : i32
    return %arg0, %c0_i32 : i32, i32
  }
}

module attributes {stable_mosaic.version = 11 : i64} {
  func.func @_forward_kernel(%arg0: i32, %arg1: memref<16x768xbf16, #tpu.memory_space<vmem>>, %arg2: memref<1xf32, #tpu.memory_space<smem>>, %arg3: memref<768x256xbf16, #tpu.memory_space<vmem>>, %arg4: memref<256x128xbf16, #tpu.memory_space<vmem>>, %arg5: memref<1x128xf32, #tpu.memory_space<vmem>>, %arg6: memref<16x128xf32, #tpu.memory_space<vmem>>) attributes {dimension_semantics = [#tpu.dimension_semantics<parallel>], iteration_bounds = array<i64: 1>, scalar_prefetch = 0 : i64, scratch_operands = 0 : i64, tpu.core_type = #tpu.core_type<tc>, window_params = [{transform_indices = @transform_0, window_bounds = array<i64: 16, 768>}, {transform_indices = @transform_1, window_bounds = array<i64: 1>}, {pipeline_mode = #tpu.pipeline_mode<synchronous>, transform_indices = @transform_2, window_bounds = array<i64: 768, 256>}, {pipeline_mode = #tpu.pipeline_mode<synchronous>, transform_indices = @transform_3, window_bounds = array<i64: 256, 128>}, {pipeline_mode = #tpu.pipeline_mode<synchronous>, transform_indices = @transform_4, window_bounds = array<i64: 1, 128>}, {transform_indices = @transform_5, window_bounds = array<i64: 16, 128>}]} {
    %c0 = arith.constant 0 : index
    %c0_0 = arith.constant 0 : index
    %0 = vector.load %arg1[%c0, %c0_0] : memref<16x768xbf16, #tpu.memory_space<vmem>>, vector<16x768xbf16>
    %c0_1 = arith.constant 0 : index
    %c0_2 = arith.constant 0 : index
    %1 = vector.load %arg3[%c0_1, %c0_2] : memref<768x256xbf16, #tpu.memory_space<vmem>>, vector<768x256xbf16>
    %cst = arith.constant dense<0.000000e+00> : vector<16x256xf32>
    %2 = tpu.matmul %0, %1, %cst {dimension_numbers = #tpu.dot_dimension_numbers<[1], [0], [0], [1], [0, 0, 1, 1], [], []>} : vector<16x768xbf16>, vector<768x256xbf16>, vector<16x256xf32> -> vector<16x256xf32>
    %c0_3 = arith.constant 0 : index
    %3 = memref.load %arg2[%c0_3] : memref<1xf32, #tpu.memory_space<smem>>
    %4 = vector.broadcast %3 : f32 to vector<16x256xf32>
    %5 = arith.addf %2, %4 : vector<16x256xf32>
    %cst_4 = arith.constant 0.000000e+00 : f32
    %6 = vector.broadcast %cst_4 : f32 to vector<16x256xf32>
    %7 = arith.maximumf %5, %6 : vector<16x256xf32>
    %8 = arith.truncf %7 : vector<16x256xf32> to vector<16x256xbf16>
    %c0_5 = arith.constant 0 : index
    %c0_6 = arith.constant 0 : index
    %9 = vector.load %arg4[%c0_5, %c0_6] : memref<256x128xbf16, #tpu.memory_space<vmem>>, vector<256x128xbf16>
    %cst_7 = arith.constant dense<0.000000e+00> : vector<16x128xf32>
    %10 = tpu.matmul %8, %9, %cst_7 {dimension_numbers = #tpu.dot_dimension_numbers<[1], [0], [0], [1], [0, 0, 1, 1], [], []>} : vector<16x256xbf16>, vector<256x128xbf16>, vector<16x128xf32> -> vector<16x128xf32>
    %c0_8 = arith.constant 0 : index
    %c0_9 = arith.constant 0 : index
    %11 = vector.load %arg5[%c0_8, %c0_9] : memref<1x128xf32, #tpu.memory_space<vmem>>, vector<1x128xf32>
    %12 = vector.broadcast %11 : vector<1x128xf32> to vector<16x128xf32>
    %13 = arith.addf %10, %12 : vector<16x128xf32>
    %c0_10 = arith.constant 0 : index
    %c0_11 = arith.constant 0 : index
    %14 = vector.load %arg6[%c0_10, %c0_11] : memref<16x128xf32, #tpu.memory_space<vmem>>, vector<16x128xf32>
    tpu.vector_store %arg6[%c0_10, %c0_11], %13 {strides = array<i32>} : memref<16x128xf32, #tpu.memory_space<vmem>>, vector<16x128xf32>,
    return
  }
  func.func @transform_0(%arg0: i32) -> (i32, i32) {
    %c0_i32 = arith.constant 0 : i32
    %c0_i32_0 = arith.constant 0 : i32
    return %arg0, %c0_i32 : i32, i32
  }
  func.func @transform_1(%arg0: i32) -> i32 {
    %c0_i32 = arith.constant 0 : i32
    %c0_i32_0 = arith.constant 0 : i32
    return %c0_i32 : i32
  }
  func.func @transform_2(%arg0: i32) -> (i32, i32) {
    %c0_i32 = arith.constant 0 : i32
    %c0_i32_0 = arith.constant 0 : i32
    %c0_i32_1 = arith.constant 0 : i32
    return %c0_i32, %c0_i32_0 : i32, i32
  }
  func.func @transform_3(%arg0: i32) -> (i32, i32) {
    %c0_i32 = arith.constant 0 : i32
    %c0_i32_0 = arith.constant 0 : i32
    %c0_i32_1 = arith.constant 0 : i32
    return %c0_i32, %c0_i32_0 : i32, i32
  }
  func.func @transform_4(%arg0: i32) -> (i32, i32) {
    %c0_i32 = arith.constant 0 : i32
    %c0_i32_0 = arith.constant 0 : i32
    %c0_i32_1 = arith.constant 0 : i32
    return %c0_i32, %c0_i32_0 : i32, i32
  }
  func.func @transform_5(%arg0: i32) -> (i32, i32) {
    %c0_i32 = arith.constant 0 : i32
    %c0_i32_0 = arith.constant 0 : i32
    return %arg0, %c0_i32 : i32, i32
  }
}

</mosaic_0001>

<llo_original>
// kernel: tpu_custom_call.1
$region0: #{tpu_custom_call.1}
  #allocation0 [shape = 'u32[]', space=smem, size = 0x4, offset = 0x4, fixed_abs, tag = 'smem constant byte address 0x4 - core index']
  #allocation1 [shape = 'u32[144,128]{1,0:T(1,128)}', space=vmem, size = 0x12000, scoped, tag = 'internal scratch']
  #allocation2 [shape = 'f32[1]{0:T(128)S(6)}', space=smem, size = 0x200, scoped, tag = 'scoped memory for tpu_custom_call.1']
  %s0 = inlined_call_operand.hbm [shape: bf16[16,768], index: 0, kind: input, shape index: {}]
  %s1 = inlined_call_operand.<no memory space> [shape: f32[1], index: 1, kind: input, shape index: {}]
  %s2 = inlined_call_operand.hbm [shape: bf16[768,256], index: 2, kind: input, shape index: {}]
  %s3 = inlined_call_operand.hbm [shape: bf16[256,128], index: 3, kind: input, shape index: {}]
  %s4 = inlined_call_operand.vmem [shape: f32[1,128], index: 4, kind: input, shape index: {}]
  %s5 = inlined_call_operand.hbm [shape: f32[16,128], index: 5, kind: output, shape index: {}]
  %s6 = sld [smem:[#allocation0]]
  $region42: #{tpu_custom_call.1} parent=0
    _
  %s8 = ssub.s32 1, %s6
  %s9 = scalar_select 0, %s8, %s6
  %10 = sst [smem:[#allocation2]] %s1
  $region1: #{tpu_custom_call.1} parent=0
    #allocation3 [shape = 'u8[24576]{0}', space=vmem, size = 0x6000, scoped, tag = 'input window, operand 0, single buffered']
    #allocation4 [shape = 's32[1]{0}', space=sflag, size = 0x4, scoped, tag = 'scoped memory for tpu_custom_call.1']
    #allocation5 [shape = 's32[1]{0}', space=sflag, size = 0x4, scoped, tag = 'scoped memory for tpu_custom_call.1']
    #allocation6 [shape = 'u8[393216]{0}', space=vmem, size = 0x60000, scoped, tag = 'input window, operand 2, single buffered']
    #allocation7 [shape = 's32[1]{0}', space=sflag, size = 0x4, scoped, tag = 'scoped memory for tpu_custom_call.1']
    #allocation8 [shape = 'u8[65536]{0}', space=vmem, size = 0x10000, scoped, tag = 'input window, operand 3, single buffered']
    #allocation9 [shape = 'u8[8192]{0}', space=vmem, size = 0x2000, scoped, tag = 'output window, operand 0, single buffered']
    %11 = vsyncpa [#allocation4], 0
    %12 = vsyncpa [#allocation7], 0
    %13 = vsyncpa [#allocation5], 0
    // Predicated region
    $region2: #{tpu_custom_call.1} parent=1 // pred_check
      _
    $region3: #{tpu_custom_call.1} parent=1 // pred_check_branch
      %15 = sbr.rel (0) target = $region5
    $region4: #{tpu_custom_call.1} parent=1 // pred_region
      %s17 = ssub.s32 768, 768
      %18 = vsyncadd [#allocation4], %s17
      %s19 = sshll.u32 [#allocation3], 4
      %s20 = int_to_ptr.vmem [resolvable:$true] %s19
      %25 = dma.hbm_to_vmem [thread:$0]  %s0, 768, %s20, [#allocation4], 384, 384, 24
    $region5: #{tpu_custom_call.1} parent=1 // pred_fallthru
      _
    // Predicated region
    $region6: #{tpu_custom_call.1} parent=1 // pred_check
      _
    $region7: #{tpu_custom_call.1} parent=1 // pred_check_branch
      %27 = sbr.rel (0) target = $region9
    $region8: #{tpu_custom_call.1} parent=1 // pred_region
      _
    $region9: #{tpu_custom_call.1} parent=1 // pred_fallthru
      _
    // Predicated region
    $region10: #{tpu_custom_call.1} parent=1 // pred_check
      _
    $region11: #{tpu_custom_call.1} parent=1 // pred_check_branch
      %29 = sbr.rel (0) target = $region13
    $region12: #{tpu_custom_call.1} parent=1 // pred_region
      %s31 = ssub.s32 12288, 12288
      %32 = vsyncadd [#allocation7], %s31
      %s33 = sshll.u32 [#allocation6], 4
      %s34 = int_to_ptr.vmem [resolvable:$true] %s33
      %39 = dma.hbm_to_vmem [thread:$0]  %s2, 12288, %s34, [#allocation7], 128, 128, 8
    $region13: #{tpu_custom_call.1} parent=1 // pred_fallthru
      _
    // Predicated region
    $region14: #{tpu_custom_call.1} parent=1 // pred_check
      _
    $region15: #{tpu_custom_call.1} parent=1 // pred_check_branch
      %41 = sbr.rel (0) target = $region17
    $region16: #{tpu_custom_call.1} parent=1 // pred_region
      %s43 = ssub.s32 2048, 2048
      %44 = vsyncadd [#allocation7], %s43
      %s45 = sshll.u32 [#allocation8], 4
      %s46 = int_to_ptr.vmem [resolvable:$true] %s45
      %51 = dma.hbm_to_vmem [thread:$0]  %s3, 2048, %s46, [#allocation7], 64, 64, 4
    $region17: #{tpu_custom_call.1} parent=1 // pred_fallthru
      _
    // Predicated region
    $region18: #{tpu_custom_call.1} parent=1 // pred_check
      _
    $region19: #{tpu_custom_call.1} parent=1 // pred_check_branch
      %53 = sbr.rel (0) target = $region21
    $region20: #{tpu_custom_call.1} parent=1 // pred_region
      _
    $region21: #{tpu_custom_call.1} parent=1 // pred_fallthru
      _
    // Predicated region
    $region22: #{tpu_custom_call.1} parent=1 // pred_check
      _
    $region23: #{tpu_custom_call.1} parent=1 // pred_check_branch
      %55 = sbr.rel (0) target = $region25
    $region24: #{tpu_custom_call.1} parent=1 // pred_region
      %56 = dma.done [#allocation4], 768
    $region25: #{tpu_custom_call.1} parent=1 // pred_fallthru
      _
    // Predicated region
    $region26: #{tpu_custom_call.1} parent=1 // pred_check
      _
    $region27: #{tpu_custom_call.1} parent=1 // pred_check_branch
      %58 = sbr.rel (0) target = $region29
    $region28: #{tpu_custom_call.1} parent=1 // pred_region
      %59 = dma.done [#allocation7], 12288
    $region29: #{tpu_custom_call.1} parent=1 // pred_fallthru
      _
    // Predicated region
    $region30: #{tpu_custom_call.1} parent=1 // pred_check
      _
    $region31: #{tpu_custom_call.1} parent=1 // pred_check_branch
      %61 = sbr.rel (0) target = $region33
    $region32: #{tpu_custom_call.1} parent=1 // pred_region
      %62 = dma.done [#allocation7], 2048
    $region33: #{tpu_custom_call.1} parent=1 // pred_fallthru
      _
    %v64 = vld [vmem:[#allocation3] sm:$0xff]
    %v65 = vld [vmem:[#allocation3 + $0x8] sm:$0xff]
    %v66 = vld [vmem:[#allocation3 + $0x10] sm:$0xff]
    %v67 = vld [vmem:[#allocation3 + $0x18] sm:$0xff]
    %v68 = vld [vmem:[#allocation3 + $0x20] sm:$0xff]
    %v69 = vld [vmem:[#allocation3 + $0x28] sm:$0xff]
    %v70 = vld [vmem:[#allocation6] sm:$0xff]
    %v71 = vld [vmem:[#allocation6 + $0x8] sm:$0xff]
    %v72 = vld [vmem:[#allocation6 + $0x10] sm:$0xff]
    %v73 = vld [vmem:[#allocation6 + $0x18] sm:$0xff]
    %v74 = vld [vmem:[#allocation6 + $0x20] sm:$0xff]
    %v75 = vld [vmem:[#allocation6 + $0x28] sm:$0xff]
    %v76 = vld [vmem:[#allocation6 + $0x30] sm:$0xff]
    %v77 = vld [vmem:[#allocation6 + $0x38] sm:$0xff]
    %v78 = vld [vmem:[#allocation6 + $0x40] sm:$0xff]
    %v79 = vld [vmem:[#allocation6 + $0x48] sm:$0xff]
    %v80 = vld [vmem:[#allocation6 + $0x50] sm:$0xff]
    %v81 = vld [vmem:[#allocation6 + $0x58] sm:$0xff]
    %v82 = vld [vmem:[#allocation6 + $0x60] sm:$0xff]
    %v83 = vld [vmem:[#allocation6 + $0x68] sm:$0xff]
    %v84 = vld [vmem:[#allocation6 + $0x70] sm:$0xff]
    %v85 = vld [vmem:[#allocation6 + $0x78] sm:$0xff]
    %v86 = vld [vmem:[#allocation6 + $0x80] sm:$0xff]
    %v87 = vld [vmem:[#allocation6 + $0x88] sm:$0xff]
    %v88 = vld [vmem:[#allocation6 + $0x90] sm:$0xff]
    %v89 = vld [vmem:[#allocation6 + $0x98] sm:$0xff]
    %v90 = vld [vmem:[#allocation6 + $0xa0] sm:$0xff]
    %v91 = vld [vmem:[#allocation6 + $0xa8] sm:$0xff]
    %v92 = vld [vmem:[#allocation6 + $0xb0] sm:$0xff]
    %v93 = vld [vmem:[#allocation6 + $0xb8] sm:$0xff]
    %v94 = vld [vmem:[#allocation6 + $0xc0] sm:$0xff]
    %v95 = vld [vmem:[#allocation6 + $0xc8] sm:$0xff]
    %v96 = vld [vmem:[#allocation6 + $0xd0] sm:$0xff]
    %v97 = vld [vmem:[#allocation6 + $0xd8] sm:$0xff]
    %v98 = vld [vmem:[#allocation6 + $0xe0] sm:$0xff]
    %v99 = vld [vmem:[#allocation6 + $0xe8] sm:$0xff]
    %v100 = vld [vmem:[#allocation6 + $0xf0] sm:$0xff]
    %v101 = vld [vmem:[#allocation6 + $0xf8] sm:$0xff]
    %v102 = vld [vmem:[#allocation6 + $0x100] sm:$0xff]
    %v103 = vld [vmem:[#allocation6 + $0x108] sm:$0xff]
    %v104 = vld [vmem:[#allocation6 + $0x110] sm:$0xff]
    %v105 = vld [vmem:[#allocation6 + $0x118] sm:$0xff]
    %v106 = vld [vmem:[#allocation6 + $0x120] sm:$0xff]
    %v107 = vld [vmem:[#allocation6 + $0x128] sm:$0xff]
    %v108 = vld [vmem:[#allocation6 + $0x130] sm:$0xff]
    %v109 = vld [vmem:[#allocation6 + $0x138] sm:$0xff]
    %v110 = vld [vmem:[#allocation6 + $0x140] sm:$0xff]
    %v111 = vld [vmem:[#allocation6 + $0x148] sm:$0xff]
    %v112 = vld [vmem:[#allocation6 + $0x150] sm:$0xff]
    %v113 = vld [vmem:[#allocation6 + $0x158] sm:$0xff]
    %v114 = vld [vmem:[#allocation6 + $0x160] sm:$0xff]
    %v115 = vld [vmem:[#allocation6 + $0x168] sm:$0xff]
    %v116 = vld [vmem:[#allocation6 + $0x170] sm:$0xff]
    %v117 = vld [vmem:[#allocation6 + $0x178] sm:$0xff]
    %v118 = vld [vmem:[#allocation6 + $0x180] sm:$0xff]
    %v119 = vld [vmem:[#allocation6 + $0x188] sm:$0xff]
    %v120 = vld [vmem:[#allocation6 + $0x190] sm:$0xff]
    %v121 = vld [vmem:[#allocation6 + $0x198] sm:$0xff]
    %v122 = vld [vmem:[#allocation6 + $0x1a0] sm:$0xff]
    %v123 = vld [vmem:[#allocation6 + $0x1a8] sm:$0xff]
    %v124 = vld [vmem:[#allocation6 + $0x1b0] sm:$0xff]
    %v125 = vld [vmem:[#allocation6 + $0x1b8] sm:$0xff]
    %v126 = vld [vmem:[#allocation6 + $0x1c0] sm:$0xff]
    %v127 = vld [vmem:[#allocation6 + $0x1c8] sm:$0xff]
    %v128 = vld [vmem:[#allocation6 + $0x1d0] sm:$0xff]
    %v129 = vld [vmem:[#allocation6 + $0x1d8] sm:$0xff]
    %v130 = vld [vmem:[#allocation6 + $0x1e0] sm:$0xff]
    %v131 = vld [vmem:[#allocation6 + $0x1e8] sm:$0xff]
    %v132 = vld [vmem:[#allocation6 + $0x1f0] sm:$0xff]
    %v133 = vld [vmem:[#allocation6 + $0x1f8] sm:$0xff]
    %v134 = vld [vmem:[#allocation6 + $0x200] sm:$0xff]
    %v135 = vld [vmem:[#allocation6 + $0x208] sm:$0xff]
    %v136 = vld [vmem:[#allocation6 + $0x210] sm:$0xff]
    %v137 = vld [vmem:[#allocation6 + $0x218] sm:$0xff]
    %v138 = vld [vmem:[#allocation6 + $0x220] sm:$0xff]
    %v139 = vld [vmem:[#allocation6 + $0x228] sm:$0xff]
    %v140 = vld [vmem:[#allocation6 + $0x230] sm:$0xff]
    %v141 = vld [vmem:[#allocation6 + $0x238] sm:$0xff]
    %v142 = vld [vmem:[#allocation6 + $0x240] sm:$0xff]
    %v143 = vld [vmem:[#allocation6 + $0x248] sm:$0xff]
    %v144 = vld [vmem:[#allocation6 + $0x250] sm:$0xff]
    %v145 = vld [vmem:[#allocation6 + $0x258] sm:$0xff]
    %v146 = vld [vmem:[#allocation6 + $0x260] sm:$0xff]
    %v147 = vld [vmem:[#allocation6 + $0x268] sm:$0xff]
    %v148 = vld [vmem:[#allocation6 + $0x270] sm:$0xff]
    %v149 = vld [vmem:[#allocation6 + $0x278] sm:$0xff]
    %v150 = vld [vmem:[#allocation6 + $0x280] sm:$0xff]
    %v151 = vld [vmem:[#allocation6 + $0x288] sm:$0xff]
    %v152 = vld [vmem:[#allocation6 + $0x290] sm:$0xff]
    %v153 = vld [vmem:[#allocation6 + $0x298] sm:$0xff]
    %v154 = vld [vmem:[#allocation6 + $0x2a0] sm:$0xff]
    %v155 = vld [vmem:[#allocation6 + $0x2a8] sm:$0xff]
    %v156 = vld [vmem:[#allocation6 + $0x2b0] sm:$0xff]
    %v157 = vld [vmem:[#allocation6 + $0x2b8] sm:$0xff]
    %v158 = vld [vmem:[#allocation6 + $0x2c0] sm:$0xff]
    %v159 = vld [vmem:[#allocation6 + $0x2c8] sm:$0xff]
    %v160 = vld [vmem:[#allocation6 + $0x2d0] sm:$0xff]
    %v161 = vld [vmem:[#allocation6 + $0x2d8] sm:$0xff]
    %v162 = vld [vmem:[#allocation6 + $0x2e0] sm:$0xff]
    %v163 = vld [vmem:[#allocation6 + $0x2e8] sm:$0xff]
    %v164 = vld [vmem:[#allocation6 + $0x2f0] sm:$0xff]
    %v165 = vld [vmem:[#allocation6 + $0x2f8] sm:$0xff]
    %s166 = sld [smem:[#allocation2]]
    %v167 = vstv %s166
    %v174 = vunpack.c.l.b16 %v64
    %v175 = vunpack.c.h.b16 %v64
    %v176 = vunpack.c.l.b16 %v65
    %v177 = vunpack.c.h.b16 %v65
    %v178 = vunpack.c.l.b16 %v66
    %v179 = vunpack.c.h.b16 %v66
    %v180 = vunpack.c.l.b16 %v67
    %v181 = vunpack.c.h.b16 %v67
    %v182 = vunpack.c.l.b16 %v68
    %v183 = vunpack.c.h.b16 %v68
    %v184 = vunpack.c.l.b16 %v69
    %v185 = vunpack.c.h.b16 %v69
    %v186 = vpack.c.b16 %v180, %v174
    %v187 = vpack.c.b16 %v181, %v175
    %v188 = vpack.c.b16 %v182, %v176
    %v189 = vpack.c.b16 %v183, %v177
    %v190 = vpack.c.b16 %v184, %v178
    %v191 = vpack.c.b16 %v185, %v179
    %v294 = vunpack.c.l.b16 %v70
    %v295 = vunpack.c.h.b16 %v70
    %v296 = vunpack.c.l.b16 %v71
    %v297 = vunpack.c.h.b16 %v71
    %v298 = vunpack.c.l.b16 %v72
    %v299 = vunpack.c.h.b16 %v72
    %v300 = vunpack.c.l.b16 %v73
    %v301 = vunpack.c.h.b16 %v73
    %v302 = vunpack.c.l.b16 %v74
    %v303 = vunpack.c.h.b16 %v74
    %v304 = vunpack.c.l.b16 %v75
    %v305 = vunpack.c.h.b16 %v75
    %v306 = vunpack.c.l.b16 %v76
    %v307 = vunpack.c.h.b16 %v76
    %v308 = vunpack.c.l.b16 %v77
    %v309 = vunpack.c.h.b16 %v77
    %v310 = vunpack.c.l.b16 %v78
    %v311 = vunpack.c.h.b16 %v78
    %v312 = vunpack.c.l.b16 %v79
    %v313 = vunpack.c.h.b16 %v79
    %v314 = vunpack.c.l.b16 %v80
    %v315 = vunpack.c.h.b16 %v80
    %v316 = vunpack.c.l.b16 %v81
    %v317 = vunpack.c.h.b16 %v81
    %v318 = vunpack.c.l.b16 %v82
    %v319 = vunpack.c.h.b16 %v82
    %v320 = vunpack.c.l.b16 %v83
    %v321 = vunpack.c.h.b16 %v83
    %v322 = vunpack.c.l.b16 %v84
    %v323 = vunpack.c.h.b16 %v84
    %v324 = vunpack.c.l.b16 %v85
    %v325 = vunpack.c.h.b16 %v85
    %v326 = vunpack.c.l.b16 %v86
    %v327 = vunpack.c.h.b16 %v86
    %v328 = vunpack.c.l.b16 %v87
    %v329 = vunpack.c.h.b16 %v87
    %v330 = vunpack.c.l.b16 %v88
    %v331 = vunpack.c.h.b16 %v88
    %v332 = vunpack.c.l.b16 %v89
    %v333 = vunpack.c.h.b16 %v89
    %v334 = vunpack.c.l.b16 %v90
    %v335 = vunpack.c.h.b16 %v90
    %v336 = vunpack.c.l.b16 %v91
    %v337 = vunpack.c.h.b16 %v91
    %v338 = vunpack.c.l.b16 %v92
    %v339 = vunpack.c.h.b16 %v92
    %v340 = vunpack.c.l.b16 %v93
    %v341 = vunpack.c.h.b16 %v93
    %v342 = vunpack.c.l.b16 %v94
    %v343 = vunpack.c.h.b16 %v94
    %v344 = vunpack.c.l.b16 %v95
    %v345 = vunpack.c.h.b16 %v95
    %v346 = vunpack.c.l.b16 %v96
    %v347 = vunpack.c.h.b16 %v96
    %v348 = vunpack.c.l.b16 %v97
    %v349 = vunpack.c.h.b16 %v97
    %v350 = vunpack.c.l.b16 %v98
    %v351 = vunpack.c.h.b16 %v98
    %v352 = vunpack.c.l.b16 %v99
    %v353 = vunpack.c.h.b16 %v99
    %v354 = vunpack.c.l.b16 %v100
    %v355 = vunpack.c.h.b16 %v100
    %v356 = vunpack.c.l.b16 %v101
    %v357 = vunpack.c.h.b16 %v101
    %v358 = vunpack.c.l.b16 %v102
    %v359 = vunpack.c.h.b16 %v102
    %v360 = vunpack.c.l.b16 %v103
    %v361 = vunpack.c.h.b16 %v103
    %v362 = vunpack.c.l.b16 %v104
    %v363 = vunpack.c.h.b16 %v104
    %v364 = vunpack.c.l.b16 %v105
    %v365 = vunpack.c.h.b16 %v105
    %v366 = vunpack.c.l.b16 %v106
    %v367 = vunpack.c.h.b16 %v106
    %v368 = vunpack.c.l.b16 %v107
    %v369 = vunpack.c.h.b16 %v107
    %v370 = vunpack.c.l.b16 %v108
    %v371 = vunpack.c.h.b16 %v108
    %v372 = vunpack.c.l.b16 %v109
    %v373 = vunpack.c.h.b16 %v109
    %v374 = vunpack.c.l.b16 %v110
    %v375 = vunpack.c.h.b16 %v110
    %v376 = vunpack.c.l.b16 %v111
    %v377 = vunpack.c.h.b16 %v111
    %v378 = vunpack.c.l.b16 %v112
    %v379 = vunpack.c.h.b16 %v112
    %v380 = vunpack.c.l.b16 %v113
    %v381 = vunpack.c.h.b16 %v113
    %v382 = vunpack.c.l.b16 %v114
    %v383 = vunpack.c.h.b16 %v114
    %v384 = vunpack.c.l.b16 %v115
    %v385 = vunpack.c.h.b16 %v115
    %v386 = vunpack.c.l.b16 %v116
    %v387 = vunpack.c.h.b16 %v116
    %v388 = vunpack.c.l.b16 %v117
    %v389 = vunpack.c.h.b16 %v117
    %v390 = vunpack.c.l.b16 %v118
    %v391 = vunpack.c.h.b16 %v118
    %v392 = vunpack.c.l.b16 %v119
    %v393 = vunpack.c.h.b16 %v119
    %v394 = vunpack.c.l.b16 %v120
    %v395 = vunpack.c.h.b16 %v120
    %v396 = vunpack.c.l.b16 %v121
    %v397 = vunpack.c.h.b16 %v121
    %v398 = vunpack.c.l.b16 %v122
    %v399 = vunpack.c.h.b16 %v122
    %v400 = vunpack.c.l.b16 %v123
    %v401 = vunpack.c.h.b16 %v123
    %v402 = vunpack.c.l.b16 %v124
    %v403 = vunpack.c.h.b16 %v124
    %v404 = vunpack.c.l.b16 %v125
    %v405 = vunpack.c.h.b16 %v125
    %v406 = vunpack.c.l.b16 %v126
    %v407 = vunpack.c.h.b16 %v126
    %v408 = vunpack.c.l.b16 %v127
    %v409 = vunpack.c.h.b16 %v127
    %v410 = vunpack.c.l.b16 %v128
    %v411 = vunpack.c.h.b16 %v128
    %v412 = vunpack.c.l.b16 %v129
    %v413 = vunpack.c.h.b16 %v129
    %v414 = vunpack.c.l.b16 %v130
    %v415 = vunpack.c.h.b16 %v130
    %v416 = vunpack.c.l.b16 %v131
    %v417 = vunpack.c.h.b16 %v131
    %v418 = vunpack.c.l.b16 %v132
    %v419 = vunpack.c.h.b16 %v132
    %v420 = vunpack.c.l.b16 %v133
    %v421 = vunpack.c.h.b16 %v133
    %v422 = vunpack.c.l.b16 %v134
    %v423 = vunpack.c.h.b16 %v134
    %v424 = vunpack.c.l.b16 %v135
    %v425 = vunpack.c.h.b16 %v135
    %v426 = vunpack.c.l.b16 %v136
    %v427 = vunpack.c.h.b16 %v136
    %v428 = vunpack.c.l.b16 %v137
    %v429 = vunpack.c.h.b16 %v137
    %v430 = vunpack.c.l.b16 %v138
    %v431 = vunpack.c.h.b16 %v138
    %v432 = vunpack.c.l.b16 %v139
    %v433 = vunpack.c.h.b16 %v139
    %v434 = vunpack.c.l.b16 %v140
    %v435 = vunpack.c.h.b16 %v140
    %v436 = vunpack.c.l.b16 %v141
    %v437 = vunpack.c.h.b16 %v141
    %v438 = vunpack.c.l.b16 %v142
    %v439 = vunpack.c.h.b16 %v142
    %v440 = vunpack.c.l.b16 %v143
    %v441 = vunpack.c.h.b16 %v143
    %v442 = vunpack.c.l.b16 %v144
    %v443 = vunpack.c.h.b16 %v144
    %v444 = vunpack.c.l.b16 %v145
    %v445 = vunpack.c.h.b16 %v145
    %v446 = vunpack.c.l.b16 %v146
    %v447 = vunpack.c.h.b16 %v146
    %v448 = vunpack.c.l.b16 %v147
    %v449 = vunpack.c.h.b16 %v147
    %v450 = vunpack.c.l.b16 %v148
    %v451 = vunpack.c.h.b16 %v148
    %v452 = vunpack.c.l.b16 %v149
    %v453 = vunpack.c.h.b16 %v149
    %v454 = vunpack.c.l.b16 %v150
    %v455 = vunpack.c.h.b16 %v150
    %v456 = vunpack.c.l.b16 %v151
    %v457 = vunpack.c.h.b16 %v151
    %v458 = vunpack.c.l.b16 %v152
    %v459 = vunpack.c.h.b16 %v152
    %v460 = vunpack.c.l.b16 %v153
    %v461 = vunpack.c.h.b16 %v153
    %v462 = vunpack.c.l.b16 %v154
    %v463 = vunpack.c.h.b16 %v154
    %v464 = vunpack.c.l.b16 %v155
    %v465 = vunpack.c.h.b16 %v155
    %v466 = vunpack.c.l.b16 %v156
    %v467 = vunpack.c.h.b16 %v156
    %v468 = vunpack.c.l.b16 %v157
    %v469 = vunpack.c.h.b16 %v157
    %v470 = vunpack.c.l.b16 %v158
    %v471 = vunpack.c.h.b16 %v158
    %v472 = vunpack.c.l.b16 %v159
    %v473 = vunpack.c.h.b16 %v159
    %v474 = vunpack.c.l.b16 %v160
    %v475 = vunpack.c.h.b16 %v160
    %v476 = vunpack.c.l.b16 %v161
    %v477 = vunpack.c.h.b16 %v161
    %v478 = vunpack.c.l.b16 %v162
    %v479 = vunpack.c.h.b16 %v162
    %v480 = vunpack.c.l.b16 %v163
    %v481 = vunpack.c.h.b16 %v163
    %v482 = vunpack.c.l.b16 %v164
    %v483 = vunpack.c.h.b16 %v164
    %v484 = vunpack.c.l.b16 %v165
    %v485 = vunpack.c.h.b16 %v165
    %v486 = vpack.c.b16 %v296, %v294
    %v487 = vpack.c.b16 %v297, %v295
    %v488 = vpack.c.b16 %v300, %v298
    %v489 = vpack.c.b16 %v301, %v299
    %v490 = vpack.c.b16 %v304, %v302
    %v491 = vpack.c.b16 %v305, %v303
    %v492 = vpack.c.b16 %v308, %v306
    %v493 = vpack.c.b16 %v309, %v307
    %v494 = vpack.c.b16 %v312, %v310
    %v495 = vpack.c.b16 %v313, %v311
    %v496 = vpack.c.b16 %v316, %v314
    %v497 = vpack.c.b16 %v317, %v315
    %v498 = vpack.c.b16 %v320, %v318
    %v499 = vpack.c.b16 %v321, %v319
    %v500 = vpack.c.b16 %v324, %v322
    %v501 = vpack.c.b16 %v325, %v323
    %v502 = vpack.c.b16 %v328, %v326
    %v503 = vpack.c.b16 %v329, %v327
    %v504 = vpack.c.b16 %v332, %v330
    %v505 = vpack.c.b16 %v333, %v331
    %v506 = vpack.c.b16 %v336, %v334
    %v507 = vpack.c.b16 %v337, %v335
    %v508 = vpack.c.b16 %v340, %v338
    %v509 = vpack.c.b16 %v341, %v339
    %v510 = vpack.c.b16 %v344, %v342
    %v511 = vpack.c.b16 %v345, %v343
    %v512 = vpack.c.b16 %v348, %v346
    %v513 = vpack.c.b16 %v349, %v347
    %v514 = vpack.c.b16 %v352, %v350
    %v515 = vpack.c.b16 %v353, %v351
    %v516 = vpack.c.b16 %v356, %v354
    %v517 = vpack.c.b16 %v357, %v355
    %v518 = vpack.c.b16 %v360, %v358
    %v519 = vpack.c.b16 %v361, %v359
    %v520 = vpack.c.b16 %v364, %v362
    %v521 = vpack.c.b16 %v365, %v363
    %v522 = vpack.c.b16 %v368, %v366
    %v523 = vpack.c.b16 %v369, %v367
    %v524 = vpack.c.b16 %v372, %v370
    %v525 = vpack.c.b16 %v373, %v371
    %v526 = vpack.c.b16 %v376, %v374
    %v527 = vpack.c.b16 %v377, %v375
    %v528 = vpack.c.b16 %v380, %v378
    %v529 = vpack.c.b16 %v381, %v379
    %v530 = vpack.c.b16 %v384, %v382
    %v531 = vpack.c.b16 %v385, %v383
    %v532 = vpack.c.b16 %v388, %v386
    %v533 = vpack.c.b16 %v389, %v387
    %v534 = vpack.c.b16 %v392, %v390
    %v535 = vpack.c.b16 %v393, %v391
    %v536 = vpack.c.b16 %v396, %v394
    %v537 = vpack.c.b16 %v397, %v395
    %v538 = vpack.c.b16 %v400, %v398
    %v539 = vpack.c.b16 %v401, %v399
    %v540 = vpack.c.b16 %v404, %v402
    %v541 = vpack.c.b16 %v405, %v403
    %v542 = vpack.c.b16 %v408, %v406
    %v543 = vpack.c.b16 %v409, %v407
    %v544 = vpack.c.b16 %v412, %v410
    %v545 = vpack.c.b16 %v413, %v411
    %v546 = vpack.c.b16 %v416, %v414
    %v547 = vpack.c.b16 %v417, %v415
    %v548 = vpack.c.b16 %v420, %v418
    %v549 = vpack.c.b16 %v421, %v419
    %v550 = vpack.c.b16 %v424, %v422
    %v551 = vpack.c.b16 %v425, %v423
    %v552 = vpack.c.b16 %v428, %v426
    %v553 = vpack.c.b16 %v429, %v427
    %v554 = vpack.c.b16 %v432, %v430
    %v555 = vpack.c.b16 %v433, %v431
    %v556 = vpack.c.b16 %v436, %v434
    %v557 = vpack.c.b16 %v437, %v435
    %v558 = vpack.c.b16 %v440, %v438
    %v559 = vpack.c.b16 %v441, %v439
    %v560 = vpack.c.b16 %v444, %v442
    %v561 = vpack.c.b16 %v445, %v443
    %v562 = vpack.c.b16 %v448, %v446
    %v563 = vpack.c.b16 %v449, %v447
    %v564 = vpack.c.b16 %v452, %v450
    %v565 = vpack.c.b16 %v453, %v451
    %v566 = vpack.c.b16 %v456, %v454
    %v567 = vpack.c.b16 %v457, %v455
    %v568 = vpack.c.b16 %v460, %v458
    %v569 = vpack.c.b16 %v461, %v459
    %v570 = vpack.c.b16 %v464, %v462
    %v571 = vpack.c.b16 %v465, %v463
    %v572 = vpack.c.b16 %v468, %v466
    %v573 = vpack.c.b16 %v469, %v467
    %v574 = vpack.c.b16 %v472, %v470
    %v575 = vpack.c.b16 %v473, %v471
    %v576 = vpack.c.b16 %v476, %v474
    %v577 = vpack.c.b16 %v477, %v475
    %v578 = vpack.c.b16 %v480, %v478
    %v579 = vpack.c.b16 %v481, %v479
    %v580 = vpack.c.b16 %v484, %v482
    %v581 = vpack.c.b16 %v485, %v483
    %678 = vmatprep.subr.bf16.mxu0 %v501
    %679 = vmatpush1.bf16.msra.mxu0 %v500
    %680 = vmatprep.subr.bf16.mxu0 %v499
    %681 = vmatpush1.bf16.msra.mxu0 %v498
    %682 = vmatprep.subr.bf16.mxu0 %v497
    %683 = vmatpush1.bf16.msra.mxu0 %v496
    %684 = vmatprep.subr.bf16.mxu0 %v495
    %685 = vmatpush1.bf16.msra.mxu0 %v494
    %686 = vmatprep.subr.bf16.mxu0 %v493
    %687 = vmatpush1.bf16.msra.mxu0 %v492
    %688 = vmatprep.subr.bf16.mxu0 %v491
    %689 = vmatpush1.bf16.msra.mxu0 %v490
    %690 = vmatprep.subr.bf16.mxu0 %v489
    %691 = vmatpush1.bf16.msra.mxu0 %v488
    %692 = vmatprep.subr.bf16.mxu0 %v487
    %693 = vmatpush1.bf16.msra.mxu0 %v486
    %694 = vmatprep.subr.bf16.mxu0 %v517
    %695 = vmatpush2.bf16.msra.mxu0 %v516
    %696 = vmatprep.subr.bf16.mxu0 %v515
    %697 = vmatpush2.bf16.msra.mxu0 %v514
    %698 = vmatprep.subr.bf16.mxu0 %v513
    %699 = vmatpush2.bf16.msra.mxu0 %v512
    %700 = vmatprep.subr.bf16.mxu0 %v511
    %701 = vmatpush2.bf16.msra.mxu0 %v510
    %702 = vmatprep.subr.bf16.mxu0 %v509
    %703 = vmatpush2.bf16.msra.mxu0 %v508
    %704 = vmatprep.subr.bf16.mxu0 %v507
    %705 = vmatpush2.bf16.msra.mxu0 %v506
    %706 = vmatprep.subr.bf16.mxu0 %v505
    %707 = vmatpush2.bf16.msra.mxu0 %v504
    %708 = vmatprep.subr.bf16.mxu0 %v503
    %709 = vmatpush2.bf16.msra.mxu0 %v502
    %710 = vmatprep.mubr.bf16.mxu0 %v187
    %711 = vmatmul.mubr.bf16.gmra.mxu0 %v186
    %v712 = vpop.f32.mrf.mxu0
    %v713 = vadd.f32 %v167, %v712
    %v714 = vpop.f32.mrf.mxu0
    %v715 = vadd.f32 %v167, %v714
    %v716 = vpop.f32.mrf.mxu0
    %v717 = vadd.f32 %v167, %v716
    %v718 = vpop.f32.mrf.mxu0
    %v719 = vadd.f32 %v167, %v718
    %720 = vdwg.mxu0
    %721 = vmatprep.subr.bf16.mxu0 %v533
    %722 = vmatpush1.bf16.msra.mxu0 %v532
    %723 = vmatprep.subr.bf16.mxu0 %v531
    %724 = vmatpush1.bf16.msra.mxu0 %v530
    %725 = vmatprep.subr.bf16.mxu0 %v529
    %726 = vmatpush1.bf16.msra.mxu0 %v528
    %727 = vmatprep.subr.bf16.mxu0 %v527
    %728 = vmatpush1.bf16.msra.mxu0 %v526
    %729 = vmatprep.subr.bf16.mxu0 %v525
    %730 = vmatpush1.bf16.msra.mxu0 %v524
    %731 = vmatprep.subr.bf16.mxu0 %v523
    %732 = vmatpush1.bf16.msra.mxu0 %v522
    %733 = vmatprep.subr.bf16.mxu0 %v521
    %734 = vmatpush1.bf16.msra.mxu0 %v520
    %735 = vmatprep.subr.bf16.mxu0 %v519
    %736 = vmatpush1.bf16.msra.mxu0 %v518
    %737 = vmatprep.subr.bf16.mxu0 %v549
    %738 = vmatpush2.bf16.msra.mxu0 %v548
    %739 = vmatprep.subr.bf16.mxu0 %v547
    %740 = vmatpush2.bf16.msra.mxu0 %v546
    %741 = vmatprep.subr.bf16.mxu0 %v545
    %742 = vmatpush2.bf16.msra.mxu0 %v544
    %743 = vmatprep.subr.bf16.mxu0 %v543
    %744 = vmatpush2.bf16.msra.mxu0 %v542
    %745 = vmatprep.subr.bf16.mxu0 %v541
    %746 = vmatpush2.bf16.msra.mxu0 %v540
    %747 = vmatprep.subr.bf16.mxu0 %v539
    %748 = vmatpush2.bf16.msra.mxu0 %v538
    %749 = vmatprep.subr.bf16.mxu0 %v537
    %750 = vmatpush2.bf16.msra.mxu0 %v536
    %751 = vmatprep.subr.bf16.mxu0 %v535
    %752 = vmatpush2.bf16.msra.mxu0 %v534
    %753 = vmatprep.mubr.bf16.mxu0 %v189
    %754 = vmatmul.mubr.bf16.gmra.mxu0 %v188
    %v755 = vpop.f32.mrf.mxu0
    %v756 = vadd.f32 %v713, %v755
    %v757 = vpop.f32.mrf.mxu0
    %v758 = vadd.f32 %v715, %v757
    %v759 = vpop.f32.mrf.mxu0
    %v760 = vadd.f32 %v717, %v759
    %v761 = vpop.f32.mrf.mxu0
    %v762 = vadd.f32 %v719, %v761
    %763 = vdwg.mxu0
    %764 = vmatprep.subr.bf16.mxu0 %v565
    %765 = vmatpush1.bf16.msra.mxu0 %v564
    %766 = vmatprep.subr.bf16.mxu0 %v563
    %767 = vmatpush1.bf16.msra.mxu0 %v562
    %768 = vmatprep.subr.bf16.mxu0 %v561
    %769 = vmatpush1.bf16.msra.mxu0 %v560
    %770 = vmatprep.subr.bf16.mxu0 %v559
    %771 = vmatpush1.bf16.msra.mxu0 %v558
    %772 = vmatprep.subr.bf16.mxu0 %v557
    %773 = vmatpush1.bf16.msra.mxu0 %v556
    %774 = vmatprep.subr.bf16.mxu0 %v555
    %775 = vmatpush1.bf16.msra.mxu0 %v554
    %776 = vmatprep.subr.bf16.mxu0 %v553
    %777 = vmatpush1.bf16.msra.mxu0 %v552
    %778 = vmatprep.subr.bf16.mxu0 %v551
    %779 = vmatpush1.bf16.msra.mxu0 %v550
    %780 = vmatprep.subr.bf16.mxu0 %v581
    %781 = vmatpush2.bf16.msra.mxu0 %v580
    %782 = vmatprep.subr.bf16.mxu0 %v579
    %783 = vmatpush2.bf16.msra.mxu0 %v578
    %784 = vmatprep.subr.bf16.mxu0 %v577
    %785 = vmatpush2.bf16.msra.mxu0 %v576
    %786 = vmatprep.subr.bf16.mxu0 %v575
    %787 = vmatpush2.bf16.msra.mxu0 %v574
    %788 = vmatprep.subr.bf16.mxu0 %v573
    %789 = vmatpush2.bf16.msra.mxu0 %v572
    %790 = vmatprep.subr.bf16.mxu0 %v571
    %791 = vmatpush2.bf16.msra.mxu0 %v570
    %792 = vmatprep.subr.bf16.mxu0 %v569
    %793 = vmatpush2.bf16.msra.mxu0 %v568
    %794 = vmatprep.subr.bf16.mxu0 %v567
    %795 = vmatpush2.bf16.msra.mxu0 %v566
    %796 = vmatprep.mubr.bf16.mxu0 %v191
    %797 = vmatmul.mubr.bf16.gmra.mxu0 %v190
    %v798 = vpop.f32.mrf.mxu0
    %v799 = vadd.f32 %v756, %v798
    %v800 = vpop.f32.mrf.mxu0
    %v801 = vadd.f32 %v758, %v800
    %v802 = vpop.f32.mrf.mxu0
    %v803 = vadd.f32 %v760, %v802
    %v804 = vpop.f32.mrf.mxu0
    %v805 = vadd.f32 %v762, %v804
    %806 = vdwg.mxu0
    %v807 = vmax.f32 %v799, 0.0
    %v808 = vmax.f32 %v801, 0.0
    %v809 = vmax.f32 %v803, 0.0
    %v810 = vmax.f32 %v805, 0.0
    %v811 = vpack.c.bf16 %v809, %v807
    %v812 = vpack.c.bf16 %v810, %v808
    %v813 = vld [vmem:[#allocation8] sm:$0xf]
    %v814 = vld [vmem:[#allocation8 + $0x4] sm:$0xf]
    %v815 = vld [vmem:[#allocation8 + $0x8] sm:$0xf]
    %v816 = vld [vmem:[#allocation8 + $0xc] sm:$0xf]
    %v817 = vld [vmem:[#allocation8 + $0x10] sm:$0xf]
    %v818 = vld [vmem:[#allocation8 + $0x14] sm:$0xf]
    %v819 = vld [vmem:[#allocation8 + $0x18] sm:$0xf]
    %v820 = vld [vmem:[#allocation8 + $0x1c] sm:$0xf]
    %v821 = vld [vmem:[#allocation8 + $0x20] sm:$0xf]
    %v822 = vld [vmem:[#allocation8 + $0x24] sm:$0xf]
    %v823 = vld [vmem:[#allocation8 + $0x28] sm:$0xf]
    %v824 = vld [vmem:[#allocation8 + $0x2c] sm:$0xf]
    %v825 = vld [vmem:[#allocation8 + $0x30] sm:$0xf]
    %v826 = vld [vmem:[#allocation8 + $0x34] sm:$0xf]
    %v827 = vld [vmem:[#allocation8 + $0x38] sm:$0xf]
    %v828 = vld [vmem:[#allocation8 + $0x3c] sm:$0xf]
    %v829 = vld [vmem:[#allocation8 + $0x40] sm:$0xf]
    %v830 = vld [vmem:[#allocation8 + $0x44] sm:$0xf]
    %v831 = vld [vmem:[#allocation8 + $0x48] sm:$0xf]
    %v832 = vld [vmem:[#allocation8 + $0x4c] sm:$0xf]
    %v833 = vld [vmem:[#allocation8 + $0x50] sm:$0xf]
    %v834 = vld [vmem:[#allocation8 + $0x54] sm:$0xf]
    %v835 = vld [vmem:[#allocation8 + $0x58] sm:$0xf]
    %v836 = vld [vmem:[#allocation8 + $0x5c] sm:$0xf]
    %v837 = vld [vmem:[#allocation8 + $0x60] sm:$0xf]
    %v838 = vld [vmem:[#allocation8 + $0x64] sm:$0xf]
    %v839 = vld [vmem:[#allocation8 + $0x68] sm:$0xf]
    %v840 = vld [vmem:[#allocation8 + $0x6c] sm:$0xf]
    %v841 = vld [vmem:[#allocation8 + $0x70] sm:$0xf]
    %v842 = vld [vmem:[#allocation8 + $0x74] sm:$0xf]
    %v843 = vld [vmem:[#allocation8 + $0x78] sm:$0xf]
    %v844 = vld [vmem:[#allocation8 + $0x7c] sm:$0xf]
    %v845 = vld [vmem:[%s4] sm:$0x1]
    %v847 = vlaneseq
    %v848 = vshrl.u32 %v847, 7
    %v849 = vsub.s32 0, %v848
    %v850 = vrot.slane %v845, %v849
    %v884 = vunpack.c.l.b16 %v813
    %v885 = vunpack.c.l.b16 %v814
    %v886 = vunpack.c.l.b16 %v815
    %v887 = vunpack.c.l.b16 %v816
    %v888 = vunpack.c.l.b16 %v817
    %v889 = vunpack.c.l.b16 %v818
    %v890 = vunpack.c.l.b16 %v819
    %v891 = vunpack.c.l.b16 %v820
    %v892 = vunpack.c.l.b16 %v821
    %v893 = vunpack.c.l.b16 %v822
    %v894 = vunpack.c.l.b16 %v823
    %v895 = vunpack.c.l.b16 %v824
    %v896 = vunpack.c.l.b16 %v825
    %v897 = vunpack.c.l.b16 %v826
    %v898 = vunpack.c.l.b16 %v827
    %v899 = vunpack.c.l.b16 %v828
    %v900 = vunpack.c.l.b16 %v829
    %v901 = vunpack.c.l.b16 %v830
    %v902 = vunpack.c.l.b16 %v831
    %v903 = vunpack.c.l.b16 %v832
    %v904 = vunpack.c.l.b16 %v833
    %v905 = vunpack.c.l.b16 %v834
    %v906 = vunpack.c.l.b16 %v835
    %v907 = vunpack.c.l.b16 %v836
    %v908 = vunpack.c.l.b16 %v837
    %v909 = vunpack.c.l.b16 %v838
    %v910 = vunpack.c.l.b16 %v839
    %v911 = vunpack.c.l.b16 %v840
    %v912 = vunpack.c.l.b16 %v841
    %v913 = vunpack.c.l.b16 %v842
    %v914 = vunpack.c.l.b16 %v843
    %v915 = vunpack.c.l.b16 %v844
    %v916 = vpack.c.b16 %v885, %v884
    %v917 = vpack.c.b16 %v887, %v886
    %v918 = vpack.c.b16 %v889, %v888
    %v919 = vpack.c.b16 %v891, %v890
    %v920 = vpack.c.b16 %v893, %v892
    %v921 = vpack.c.b16 %v895, %v894
    %v922 = vpack.c.b16 %v897, %v896
    %v923 = vpack.c.b16 %v899, %v898
    %v924 = vpack.c.b16 %v901, %v900
    %v925 = vpack.c.b16 %v903, %v902
    %v926 = vpack.c.b16 %v905, %v904
    %v927 = vpack.c.b16 %v907, %v906
    %v928 = vpack.c.b16 %v909, %v908
    %v929 = vpack.c.b16 %v911, %v910
    %v930 = vpack.c.b16 %v913, %v912
    %v931 = vpack.c.b16 %v915, %v914
    %948 = vmatprep.subr.bf16.mxu0 0
    %949 = vmatpush1.bf16.msra.mxu0 %v923
    %950 = vmatprep.subr.bf16.mxu0 0
    %951 = vmatpush1.bf16.msra.mxu0 %v922
    %952 = vmatprep.subr.bf16.mxu0 0
    %953 = vmatpush1.bf16.msra.mxu0 %v921
    %954 = vmatprep.subr.bf16.mxu0 0
    %955 = vmatpush1.bf16.msra.mxu0 %v920
    %956 = vmatprep.subr.bf16.mxu0 0
    %957 = vmatpush1.bf16.msra.mxu0 %v919
    %958 = vmatprep.subr.bf16.mxu0 0
    %959 = vmatpush1.bf16.msra.mxu0 %v918
    %960 = vmatprep.subr.bf16.mxu0 0
    %961 = vmatpush1.bf16.msra.mxu0 %v917
    %962 = vmatprep.subr.bf16.mxu0 0
    %963 = vmatpush1.bf16.msra.mxu0 %v916
    %964 = vmatprep.subr.bf16.mxu0 0
    %965 = vmatpush2.bf16.msra.mxu0 %v931
    %966 = vmatprep.subr.bf16.mxu0 0
    %967 = vmatpush2.bf16.msra.mxu0 %v930
    %968 = vmatprep.subr.bf16.mxu0 0
    %969 = vmatpush2.bf16.msra.mxu0 %v929
    %970 = vmatprep.subr.bf16.mxu0 0
    %971 = vmatpush2.bf16.msra.mxu0 %v928
    %972 = vmatprep.subr.bf16.mxu0 0
    %973 = vmatpush2.bf16.msra.mxu0 %v927
    %974 = vmatprep.subr.bf16.mxu0 0
    %975 = vmatpush2.bf16.msra.mxu0 %v926
    %976 = vmatprep.subr.bf16.mxu0 0
    %977 = vmatpush2.bf16.msra.mxu0 %v925
    %978 = vmatprep.subr.bf16.mxu0 0
    %979 = vmatpush2.bf16.msra.mxu0 %v924
    %980 = vmatprep.mubr.bf16.mxu0 %v812
    %981 = vmatmul.mubr.bf16.gmra.mxu0 %v811
    %v982 = vpop.f32.mrf.mxu0
    %v983 = vadd.f32 %v850, %v982
    %v984 = vpop.f32.mrf.mxu0
    %v985 = vpop.f32.mrf.mxu0
    %v986 = vadd.f32 %v850, %v985
    %v987 = vpop.f32.mrf.mxu0
    %988 = vdwg.mxu0
    %989 = vst [vmem:[#allocation9] sm:$0xff] %v983
    %990 = vst [vmem:[#allocation9 + $0x8] sm:$0xff] %v986
    // Predicated region
    $region34: #{tpu_custom_call.1} parent=1 // pred_check
      _
    $region35: #{tpu_custom_call.1} parent=1 // pred_check_branch
      %992 = sbr.rel (0) target = $region37
    $region36: #{tpu_custom_call.1} parent=1 // pred_region
      %s994 = ssub.s32 256, 256
      %995 = vsyncadd [#allocation5], %s994
      %s996 = sshll.u32 [#allocation9], 4
      %s997 = int_to_ptr.vmem [resolvable:$true] %s996
      %1002 = dma.vmem_to_hbm [thread:$0]  %s997, 256, %s5, [#allocation5], 128, 128, 8
    $region37: #{tpu_custom_call.1} parent=1 // pred_fallthru
      _
    // Predicated region
    $region38: #{tpu_custom_call.1} parent=1 // pred_check
      _
    $region39: #{tpu_custom_call.1} parent=1 // pred_check_branch
      %1004 = sbr.rel (0) target = $region41
    $region40: #{tpu_custom_call.1} parent=1 // pred_region
      %1005 = dma.done [#allocation5], 256
    $region41: #{tpu_custom_call.1} parent=1 // pred_fallthru
      _
    %1006 = vsyncpa [#allocation4], 1
    %1007 = vsyncpa [#allocation7], 1
    %1008 = vsyncpa [#allocation5], 1

// kernel: tpu_custom_call.1
$region0: #{tpu_custom_call.1}
  #allocation0 [shape = 'u32[]', space=smem, size = 0x4, offset = 0x4, fixed_abs, tag = 'smem constant byte address 0x4 - core index']
  #allocation1 [shape = 'u32[144,128]{1,0:T(1,128)}', space=vmem, size = 0x12000, scoped, tag = 'internal scratch']
  #allocation2 [shape = 'f32[1]{0:T(128)S(6)}', space=smem, size = 0x200, scoped, tag = 'scoped memory for tpu_custom_call.1']
  %s0 = inlined_call_operand.hbm [shape: bf16[16,768], index: 0, kind: input, shape index: {}]
  %s1 = inlined_call_operand.<no memory space> [shape: f32[1], index: 1, kind: input, shape index: {}]
  %s2 = inlined_call_operand.hbm [shape: bf16[768,256], index: 2, kind: input, shape index: {}]
  %s3 = inlined_call_operand.hbm [shape: bf16[256,128], index: 3, kind: input, shape index: {}]
  %s4 = inlined_call_operand.vmem [shape: f32[1,128], index: 4, kind: input, shape index: {}]
  %s5 = inlined_call_operand.hbm [shape: f32[16,128], index: 5, kind: output, shape index: {}]
  %s6 = sld [smem:[#allocation0]]
  $region42: #{tpu_custom_call.1} parent=0
    _
  %s8 = ssub.s32 1, %s6
  %s9 = scalar_select 0, %s8, %s6
  %10 = sst [smem:[#allocation2]] %s1
  $region1: #{tpu_custom_call.1} parent=0
    #allocation3 [shape = 'u8[24576]{0}', space=vmem, size = 0x6000, scoped, tag = 'input window, operand 0, single buffered']
    #allocation4 [shape = 's32[1]{0}', space=sflag, size = 0x4, scoped, tag = 'scoped memory for tpu_custom_call.1']
    #allocation5 [shape = 's32[1]{0}', space=sflag, size = 0x4, scoped, tag = 'scoped memory for tpu_custom_call.1']
    #allocation6 [shape = 'u8[393216]{0}', space=vmem, size = 0x60000, scoped, tag = 'input window, operand 2, single buffered']
    #allocation7 [shape = 's32[1]{0}', space=sflag, size = 0x4, scoped, tag = 'scoped memory for tpu_custom_call.1']
    #allocation8 [shape = 'u8[65536]{0}', space=vmem, size = 0x10000, scoped, tag = 'input window, operand 3, single buffered']
    #allocation9 [shape = 'u8[8192]{0}', space=vmem, size = 0x2000, scoped, tag = 'output window, operand 0, single buffered']
    %11 = vsyncpa [#allocation4], 0
    %12 = vsyncpa [#allocation7], 0
    %13 = vsyncpa [#allocation5], 0
    // Predicated region
    $region2: #{tpu_custom_call.1} parent=1 // pred_check
      _
    $region3: #{tpu_custom_call.1} parent=1 // pred_check_branch
      %15 = sbr.rel (0) target = $region5
    $region4: #{tpu_custom_call.1} parent=1 // pred_region
      %s17 = ssub.s32 768, 768
      %18 = vsyncadd [#allocation4], %s17
      %s19 = sshll.u32 [#allocation3], 4
      %s20 = int_to_ptr.vmem [resolvable:$true] %s19
      %25 = dma.hbm_to_vmem [thread:$0]  %s0, 768, %s20, [#allocation4], 384, 384, 24
    $region5: #{tpu_custom_call.1} parent=1 // pred_fallthru
      _
    // Predicated region
    $region6: #{tpu_custom_call.1} parent=1 // pred_check
      _
    $region7: #{tpu_custom_call.1} parent=1 // pred_check_branch
      %27 = sbr.rel (0) target = $region9
    $region8: #{tpu_custom_call.1} parent=1 // pred_region
      _
    $region9: #{tpu_custom_call.1} parent=1 // pred_fallthru
      _
    // Predicated region
    $region10: #{tpu_custom_call.1} parent=1 // pred_check
      _
    $region11: #{tpu_custom_call.1} parent=1 // pred_check_branch
      %29 = sbr.rel (0) target = $region13
    $region12: #{tpu_custom_call.1} parent=1 // pred_region
      %s31 = ssub.s32 12288, 12288
      %32 = vsyncadd [#allocation7], %s31
      %s33 = sshll.u32 [#allocation6], 4
      %s34 = int_to_ptr.vmem [resolvable:$true] %s33
      %39 = dma.hbm_to_vmem [thread:$0]  %s2, 12288, %s34, [#allocation7], 128, 128, 8
    $region13: #{tpu_custom_call.1} parent=1 // pred_fallthru
      _
    // Predicated region
    $region14: #{tpu_custom_call.1} parent=1 // pred_check
      _
    $region15: #{tpu_custom_call.1} parent=1 // pred_check_branch
      %41 = sbr.rel (0) target = $region17
    $region16: #{tpu_custom_call.1} parent=1 // pred_region
      %s43 = ssub.s32 2048, 2048
      %44 = vsyncadd [#allocation7], %s43
      %s45 = sshll.u32 [#allocation8], 4
      %s46 = int_to_ptr.vmem [resolvable:$true] %s45
      %51 = dma.hbm_to_vmem [thread:$0]  %s3, 2048, %s46, [#allocation7], 64, 64, 4
    $region17: #{tpu_custom_call.1} parent=1 // pred_fallthru
      _
    // Predicated region
    $region18: #{tpu_custom_call.1} parent=1 // pred_check
      _
    $region19: #{tpu_custom_call.1} parent=1 // pred_check_branch
      %53 = sbr.rel (0) target = $region21
    $region20: #{tpu_custom_call.1} parent=1 // pred_region
      _
    $region21: #{tpu_custom_call.1} parent=1 // pred_fallthru
      _
    // Predicated region
    $region22: #{tpu_custom_call.1} parent=1 // pred_check
      _
    $region23: #{tpu_custom_call.1} parent=1 // pred_check_branch
      %55 = sbr.rel (0) target = $region25
    $region24: #{tpu_custom_call.1} parent=1 // pred_region
      %56 = dma.done [#allocation4], 768
    $region25: #{tpu_custom_call.1} parent=1 // pred_fallthru
      _
    // Predicated region
    $region26: #{tpu_custom_call.1} parent=1 // pred_check
      _
    $region27: #{tpu_custom_call.1} parent=1 // pred_check_branch
      %58 = sbr.rel (0) target = $region29
    $region28: #{tpu_custom_call.1} parent=1 // pred_region
      %59 = dma.done [#allocation7], 12288
    $region29: #{tpu_custom_call.1} parent=1 // pred_fallthru
      _
    // Predicated region
    $region30: #{tpu_custom_call.1} parent=1 // pred_check
      _
    $region31: #{tpu_custom_call.1} parent=1 // pred_check_branch
      %61 = sbr.rel (0) target = $region33
    $region32: #{tpu_custom_call.1} parent=1 // pred_region
      %62 = dma.done [#allocation7], 2048
    $region33: #{tpu_custom_call.1} parent=1 // pred_fallthru
      _
    %v64 = vld [vmem:[#allocation3] sm:$0xff]
    %v65 = vld [vmem:[#allocation3 + $0x8] sm:$0xff]
    %v66 = vld [vmem:[#allocation3 + $0x10] sm:$0xff]
    %v67 = vld [vmem:[#allocation3 + $0x18] sm:$0xff]
    %v68 = vld [vmem:[#allocation3 + $0x20] sm:$0xff]
    %v69 = vld [vmem:[#allocation3 + $0x28] sm:$0xff]
    %v70 = vld [vmem:[#allocation6] sm:$0xff]
    %v71 = vld [vmem:[#allocation6 + $0x8] sm:$0xff]
    %v72 = vld [vmem:[#allocation6 + $0x10] sm:$0xff]
    %v73 = vld [vmem:[#allocation6 + $0x18] sm:$0xff]
    %v74 = vld [vmem:[#allocation6 + $0x20] sm:$0xff]
    %v75 = vld [vmem:[#allocation6 + $0x28] sm:$0xff]
    %v76 = vld [vmem:[#allocation6 + $0x30] sm:$0xff]
    %v77 = vld [vmem:[#allocation6 + $0x38] sm:$0xff]
    %v78 = vld [vmem:[#allocation6 + $0x40] sm:$0xff]
    %v79 = vld [vmem:[#allocation6 + $0x48] sm:$0xff]
    %v80 = vld [vmem:[#allocation6 + $0x50] sm:$0xff]
    %v81 = vld [vmem:[#allocation6 + $0x58] sm:$0xff]
    %v82 = vld [vmem:[#allocation6 + $0x60] sm:$0xff]
    %v83 = vld [vmem:[#allocation6 + $0x68] sm:$0xff]
    %v84 = vld [vmem:[#allocation6 + $0x70] sm:$0xff]
    %v85 = vld [vmem:[#allocation6 + $0x78] sm:$0xff]
    %v86 = vld [vmem:[#allocation6 + $0x80] sm:$0xff]
    %v87 = vld [vmem:[#allocation6 + $0x88] sm:$0xff]
    %v88 = vld [vmem:[#allocation6 + $0x90] sm:$0xff]
    %v89 = vld [vmem:[#allocation6 + $0x98] sm:$0xff]
    %v90 = vld [vmem:[#allocation6 + $0xa0] sm:$0xff]
    %v91 = vld [vmem:[#allocation6 + $0xa8] sm:$0xff]
    %v92 = vld [vmem:[#allocation6 + $0xb0] sm:$0xff]
    %v93 = vld [vmem:[#allocation6 + $0xb8] sm:$0xff]
    %v94 = vld [vmem:[#allocation6 + $0xc0] sm:$0xff]
    %v95 = vld [vmem:[#allocation6 + $0xc8] sm:$0xff]
    %v96 = vld [vmem:[#allocation6 + $0xd0] sm:$0xff]
    %v97 = vld [vmem:[#allocation6 + $0xd8] sm:$0xff]
    %v98 = vld [vmem:[#allocation6 + $0xe0] sm:$0xff]
    %v99 = vld [vmem:[#allocation6 + $0xe8] sm:$0xff]
    %v100 = vld [vmem:[#allocation6 + $0xf0] sm:$0xff]
    %v101 = vld [vmem:[#allocation6 + $0xf8] sm:$0xff]
    %v102 = vld [vmem:[#allocation6 + $0x100] sm:$0xff]
    %v103 = vld [vmem:[#allocation6 + $0x108] sm:$0xff]
    %v104 = vld [vmem:[#allocation6 + $0x110] sm:$0xff]
    %v105 = vld [vmem:[#allocation6 + $0x118] sm:$0xff]
    %v106 = vld [vmem:[#allocation6 + $0x120] sm:$0xff]
    %v107 = vld [vmem:[#allocation6 + $0x128] sm:$0xff]
    %v108 = vld [vmem:[#allocation6 + $0x130] sm:$0xff]
    %v109 = vld [vmem:[#allocation6 + $0x138] sm:$0xff]
    %v110 = vld [vmem:[#allocation6 + $0x140] sm:$0xff]
    %v111 = vld [vmem:[#allocation6 + $0x148] sm:$0xff]
    %v112 = vld [vmem:[#allocation6 + $0x150] sm:$0xff]
    %v113 = vld [vmem:[#allocation6 + $0x158] sm:$0xff]
    %v114 = vld [vmem:[#allocation6 + $0x160] sm:$0xff]
    %v115 = vld [vmem:[#allocation6 + $0x168] sm:$0xff]
    %v116 = vld [vmem:[#allocation6 + $0x170] sm:$0xff]
    %v117 = vld [vmem:[#allocation6 + $0x178] sm:$0xff]
    %v118 = vld [vmem:[#allocation6 + $0x180] sm:$0xff]
    %v119 = vld [vmem:[#allocation6 + $0x188] sm:$0xff]
    %v120 = vld [vmem:[#allocation6 + $0x190] sm:$0xff]
    %v121 = vld [vmem:[#allocation6 + $0x198] sm:$0xff]
    %v122 = vld [vmem:[#allocation6 + $0x1a0] sm:$0xff]
    %v123 = vld [vmem:[#allocation6 + $0x1a8] sm:$0xff]
    %v124 = vld [vmem:[#allocation6 + $0x1b0] sm:$0xff]
    %v125 = vld [vmem:[#allocation6 + $0x1b8] sm:$0xff]
    %v126 = vld [vmem:[#allocation6 + $0x1c0] sm:$0xff]
    %v127 = vld [vmem:[#allocation6 + $0x1c8] sm:$0xff]
    %v128 = vld [vmem:[#allocation6 + $0x1d0] sm:$0xff]
    %v129 = vld [vmem:[#allocation6 + $0x1d8] sm:$0xff]
    %v130 = vld [vmem:[#allocation6 + $0x1e0] sm:$0xff]
    %v131 = vld [vmem:[#allocation6 + $0x1e8] sm:$0xff]
    %v132 = vld [vmem:[#allocation6 + $0x1f0] sm:$0xff]
    %v133 = vld [vmem:[#allocation6 + $0x1f8] sm:$0xff]
    %v134 = vld [vmem:[#allocation6 + $0x200] sm:$0xff]
    %v135 = vld [vmem:[#allocation6 + $0x208] sm:$0xff]
    %v136 = vld [vmem:[#allocation6 + $0x210] sm:$0xff]
    %v137 = vld [vmem:[#allocation6 + $0x218] sm:$0xff]
    %v138 = vld [vmem:[#allocation6 + $0x220] sm:$0xff]
    %v139 = vld [vmem:[#allocation6 + $0x228] sm:$0xff]
    %v140 = vld [vmem:[#allocation6 + $0x230] sm:$0xff]
    %v141 = vld [vmem:[#allocation6 + $0x238] sm:$0xff]
    %v142 = vld [vmem:[#allocation6 + $0x240] sm:$0xff]
    %v143 = vld [vmem:[#allocation6 + $0x248] sm:$0xff]
    %v144 = vld [vmem:[#allocation6 + $0x250] sm:$0xff]
    %v145 = vld [vmem:[#allocation6 + $0x258] sm:$0xff]
    %v146 = vld [vmem:[#allocation6 + $0x260] sm:$0xff]
    %v147 = vld [vmem:[#allocation6 + $0x268] sm:$0xff]
    %v148 = vld [vmem:[#allocation6 + $0x270] sm:$0xff]
    %v149 = vld [vmem:[#allocation6 + $0x278] sm:$0xff]
    %v150 = vld [vmem:[#allocation6 + $0x280] sm:$0xff]
    %v151 = vld [vmem:[#allocation6 + $0x288] sm:$0xff]
    %v152 = vld [vmem:[#allocation6 + $0x290] sm:$0xff]
    %v153 = vld [vmem:[#allocation6 + $0x298] sm:$0xff]
    %v154 = vld [vmem:[#allocation6 + $0x2a0] sm:$0xff]
    %v155 = vld [vmem:[#allocation6 + $0x2a8] sm:$0xff]
    %v156 = vld [vmem:[#allocation6 + $0x2b0] sm:$0xff]
    %v157 = vld [vmem:[#allocation6 + $0x2b8] sm:$0xff]
    %v158 = vld [vmem:[#allocation6 + $0x2c0] sm:$0xff]
    %v159 = vld [vmem:[#allocation6 + $0x2c8] sm:$0xff]
    %v160 = vld [vmem:[#allocation6 + $0x2d0] sm:$0xff]
    %v161 = vld [vmem:[#allocation6 + $0x2d8] sm:$0xff]
    %v162 = vld [vmem:[#allocation6 + $0x2e0] sm:$0xff]
    %v163 = vld [vmem:[#allocation6 + $0x2e8] sm:$0xff]
    %v164 = vld [vmem:[#allocation6 + $0x2f0] sm:$0xff]
    %v165 = vld [vmem:[#allocation6 + $0x2f8] sm:$0xff]
    %s166 = sld [smem:[#allocation2]]
    %v167 = vstv %s166
    %v174 = vunpack.c.l.b16 %v64
    %v175 = vunpack.c.h.b16 %v64
    %v176 = vunpack.c.l.b16 %v65
    %v177 = vunpack.c.h.b16 %v65
    %v178 = vunpack.c.l.b16 %v66
    %v179 = vunpack.c.h.b16 %v66
    %v180 = vunpack.c.l.b16 %v67
    %v181 = vunpack.c.h.b16 %v67
    %v182 = vunpack.c.l.b16 %v68
    %v183 = vunpack.c.h.b16 %v68
    %v184 = vunpack.c.l.b16 %v69
    %v185 = vunpack.c.h.b16 %v69
    %v186 = vpack.c.b16 %v180, %v174
    %v187 = vpack.c.b16 %v181, %v175
    %v188 = vpack.c.b16 %v182, %v176
    %v189 = vpack.c.b16 %v183, %v177
    %v190 = vpack.c.b16 %v184, %v178
    %v191 = vpack.c.b16 %v185, %v179
    %v294 = vunpack.c.l.b16 %v70
    %v295 = vunpack.c.h.b16 %v70
    %v296 = vunpack.c.l.b16 %v71
    %v297 = vunpack.c.h.b16 %v71
    %v298 = vunpack.c.l.b16 %v72
    %v299 = vunpack.c.h.b16 %v72
    %v300 = vunpack.c.l.b16 %v73
    %v301 = vunpack.c.h.b16 %v73
    %v302 = vunpack.c.l.b16 %v74
    %v303 = vunpack.c.h.b16 %v74
    %v304 = vunpack.c.l.b16 %v75
    %v305 = vunpack.c.h.b16 %v75
    %v306 = vunpack.c.l.b16 %v76
    %v307 = vunpack.c.h.b16 %v76
    %v308 = vunpack.c.l.b16 %v77
    %v309 = vunpack.c.h.b16 %v77
    %v310 = vunpack.c.l.b16 %v78
    %v311 = vunpack.c.h.b16 %v78
    %v312 = vunpack.c.l.b16 %v79
    %v313 = vunpack.c.h.b16 %v79
    %v314 = vunpack.c.l.b16 %v80
    %v315 = vunpack.c.h.b16 %v80
    %v316 = vunpack.c.l.b16 %v81
    %v317 = vunpack.c.h.b16 %v81
    %v318 = vunpack.c.l.b16 %v82
    %v319 = vunpack.c.h.b16 %v82
    %v320 = vunpack.c.l.b16 %v83
    %v321 = vunpack.c.h.b16 %v83
    %v322 = vunpack.c.l.b16 %v84
    %v323 = vunpack.c.h.b16 %v84
    %v324 = vunpack.c.l.b16 %v85
    %v325 = vunpack.c.h.b16 %v85
    %v326 = vunpack.c.l.b16 %v86
    %v327 = vunpack.c.h.b16 %v86
    %v328 = vunpack.c.l.b16 %v87
    %v329 = vunpack.c.h.b16 %v87
    %v330 = vunpack.c.l.b16 %v88
    %v331 = vunpack.c.h.b16 %v88
    %v332 = vunpack.c.l.b16 %v89
    %v333 = vunpack.c.h.b16 %v89
    %v334 = vunpack.c.l.b16 %v90
    %v335 = vunpack.c.h.b16 %v90
    %v336 = vunpack.c.l.b16 %v91
    %v337 = vunpack.c.h.b16 %v91
    %v338 = vunpack.c.l.b16 %v92
    %v339 = vunpack.c.h.b16 %v92
    %v340 = vunpack.c.l.b16 %v93
    %v341 = vunpack.c.h.b16 %v93
    %v342 = vunpack.c.l.b16 %v94
    %v343 = vunpack.c.h.b16 %v94
    %v344 = vunpack.c.l.b16 %v95
    %v345 = vunpack.c.h.b16 %v95
    %v346 = vunpack.c.l.b16 %v96
    %v347 = vunpack.c.h.b16 %v96
    %v348 = vunpack.c.l.b16 %v97
    %v349 = vunpack.c.h.b16 %v97
    %v350 = vunpack.c.l.b16 %v98
    %v351 = vunpack.c.h.b16 %v98
    %v352 = vunpack.c.l.b16 %v99
    %v353 = vunpack.c.h.b16 %v99
    %v354 = vunpack.c.l.b16 %v100
    %v355 = vunpack.c.h.b16 %v100
    %v356 = vunpack.c.l.b16 %v101
    %v357 = vunpack.c.h.b16 %v101
    %v358 = vunpack.c.l.b16 %v102
    %v359 = vunpack.c.h.b16 %v102
    %v360 = vunpack.c.l.b16 %v103
    %v361 = vunpack.c.h.b16 %v103
    %v362 = vunpack.c.l.b16 %v104
    %v363 = vunpack.c.h.b16 %v104
    %v364 = vunpack.c.l.b16 %v105
    %v365 = vunpack.c.h.b16 %v105
    %v366 = vunpack.c.l.b16 %v106
    %v367 = vunpack.c.h.b16 %v106
    %v368 = vunpack.c.l.b16 %v107
    %v369 = vunpack.c.h.b16 %v107
    %v370 = vunpack.c.l.b16 %v108
    %v371 = vunpack.c.h.b16 %v108
    %v372 = vunpack.c.l.b16 %v109
    %v373 = vunpack.c.h.b16 %v109
    %v374 = vunpack.c.l.b16 %v110
    %v375 = vunpack.c.h.b16 %v110
    %v376 = vunpack.c.l.b16 %v111
    %v377 = vunpack.c.h.b16 %v111
    %v378 = vunpack.c.l.b16 %v112
    %v379 = vunpack.c.h.b16 %v112
    %v380 = vunpack.c.l.b16 %v113
    %v381 = vunpack.c.h.b16 %v113
    %v382 = vunpack.c.l.b16 %v114
    %v383 = vunpack.c.h.b16 %v114
    %v384 = vunpack.c.l.b16 %v115
    %v385 = vunpack.c.h.b16 %v115
    %v386 = vunpack.c.l.b16 %v116
    %v387 = vunpack.c.h.b16 %v116
    %v388 = vunpack.c.l.b16 %v117
    %v389 = vunpack.c.h.b16 %v117
    %v390 = vunpack.c.l.b16 %v118
    %v391 = vunpack.c.h.b16 %v118
    %v392 = vunpack.c.l.b16 %v119
    %v393 = vunpack.c.h.b16 %v119
    %v394 = vunpack.c.l.b16 %v120
    %v395 = vunpack.c.h.b16 %v120
    %v396 = vunpack.c.l.b16 %v121
    %v397 = vunpack.c.h.b16 %v121
    %v398 = vunpack.c.l.b16 %v122
    %v399 = vunpack.c.h.b16 %v122
    %v400 = vunpack.c.l.b16 %v123
    %v401 = vunpack.c.h.b16 %v123
    %v402 = vunpack.c.l.b16 %v124
    %v403 = vunpack.c.h.b16 %v124
    %v404 = vunpack.c.l.b16 %v125
    %v405 = vunpack.c.h.b16 %v125
    %v406 = vunpack.c.l.b16 %v126
    %v407 = vunpack.c.h.b16 %v126
    %v408 = vunpack.c.l.b16 %v127
    %v409 = vunpack.c.h.b16 %v127
    %v410 = vunpack.c.l.b16 %v128
    %v411 = vunpack.c.h.b16 %v128
    %v412 = vunpack.c.l.b16 %v129
    %v413 = vunpack.c.h.b16 %v129
    %v414 = vunpack.c.l.b16 %v130
    %v415 = vunpack.c.h.b16 %v130
    %v416 = vunpack.c.l.b16 %v131
    %v417 = vunpack.c.h.b16 %v131
    %v418 = vunpack.c.l.b16 %v132
    %v419 = vunpack.c.h.b16 %v132
    %v420 = vunpack.c.l.b16 %v133
    %v421 = vunpack.c.h.b16 %v133
    %v422 = vunpack.c.l.b16 %v134
    %v423 = vunpack.c.h.b16 %v134
    %v424 = vunpack.c.l.b16 %v135
    %v425 = vunpack.c.h.b16 %v135
    %v426 = vunpack.c.l.b16 %v136
    %v427 = vunpack.c.h.b16 %v136
    %v428 = vunpack.c.l.b16 %v137
    %v429 = vunpack.c.h.b16 %v137
    %v430 = vunpack.c.l.b16 %v138
    %v431 = vunpack.c.h.b16 %v138
    %v432 = vunpack.c.l.b16 %v139
    %v433 = vunpack.c.h.b16 %v139
    %v434 = vunpack.c.l.b16 %v140
    %v435 = vunpack.c.h.b16 %v140
    %v436 = vunpack.c.l.b16 %v141
    %v437 = vunpack.c.h.b16 %v141
    %v438 = vunpack.c.l.b16 %v142
    %v439 = vunpack.c.h.b16 %v142
    %v440 = vunpack.c.l.b16 %v143
    %v441 = vunpack.c.h.b16 %v143
    %v442 = vunpack.c.l.b16 %v144
    %v443 = vunpack.c.h.b16 %v144
    %v444 = vunpack.c.l.b16 %v145
    %v445 = vunpack.c.h.b16 %v145
    %v446 = vunpack.c.l.b16 %v146
    %v447 = vunpack.c.h.b16 %v146
    %v448 = vunpack.c.l.b16 %v147
    %v449 = vunpack.c.h.b16 %v147
    %v450 = vunpack.c.l.b16 %v148
    %v451 = vunpack.c.h.b16 %v148
    %v452 = vunpack.c.l.b16 %v149
    %v453 = vunpack.c.h.b16 %v149
    %v454 = vunpack.c.l.b16 %v150
    %v455 = vunpack.c.h.b16 %v150
    %v456 = vunpack.c.l.b16 %v151
    %v457 = vunpack.c.h.b16 %v151
    %v458 = vunpack.c.l.b16 %v152
    %v459 = vunpack.c.h.b16 %v152
    %v460 = vunpack.c.l.b16 %v153
    %v461 = vunpack.c.h.b16 %v153
    %v462 = vunpack.c.l.b16 %v154
    %v463 = vunpack.c.h.b16 %v154
    %v464 = vunpack.c.l.b16 %v155
    %v465 = vunpack.c.h.b16 %v155
    %v466 = vunpack.c.l.b16 %v156
    %v467 = vunpack.c.h.b16 %v156
    %v468 = vunpack.c.l.b16 %v157
    %v469 = vunpack.c.h.b16 %v157
    %v470 = vunpack.c.l.b16 %v158
    %v471 = vunpack.c.h.b16 %v158
    %v472 = vunpack.c.l.b16 %v159
    %v473 = vunpack.c.h.b16 %v159
    %v474 = vunpack.c.l.b16 %v160
    %v475 = vunpack.c.h.b16 %v160
    %v476 = vunpack.c.l.b16 %v161
    %v477 = vunpack.c.h.b16 %v161
    %v478 = vunpack.c.l.b16 %v162
    %v479 = vunpack.c.h.b16 %v162
    %v480 = vunpack.c.l.b16 %v163
    %v481 = vunpack.c.h.b16 %v163
    %v482 = vunpack.c.l.b16 %v164
    %v483 = vunpack.c.h.b16 %v164
    %v484 = vunpack.c.l.b16 %v165
    %v485 = vunpack.c.h.b16 %v165
    %v486 = vpack.c.b16 %v296, %v294
    %v487 = vpack.c.b16 %v297, %v295
    %v488 = vpack.c.b16 %v300, %v298
    %v489 = vpack.c.b16 %v301, %v299
    %v490 = vpack.c.b16 %v304, %v302
    %v491 = vpack.c.b16 %v305, %v303
    %v492 = vpack.c.b16 %v308, %v306
    %v493 = vpack.c.b16 %v309, %v307
    %v494 = vpack.c.b16 %v312, %v310
    %v495 = vpack.c.b16 %v313, %v311
    %v496 = vpack.c.b16 %v316, %v314
    %v497 = vpack.c.b16 %v317, %v315
    %v498 = vpack.c.b16 %v320, %v318
    %v499 = vpack.c.b16 %v321, %v319
    %v500 = vpack.c.b16 %v324, %v322
    %v501 = vpack.c.b16 %v325, %v323
    %v502 = vpack.c.b16 %v328, %v326
    %v503 = vpack.c.b16 %v329, %v327
    %v504 = vpack.c.b16 %v332, %v330
    %v505 = vpack.c.b16 %v333, %v331
    %v506 = vpack.c.b16 %v336, %v334
    %v507 = vpack.c.b16 %v337, %v335
    %v508 = vpack.c.b16 %v340, %v338
    %v509 = vpack.c.b16 %v341, %v339
    %v510 = vpack.c.b16 %v344, %v342
    %v511 = vpack.c.b16 %v345, %v343
    %v512 = vpack.c.b16 %v348, %v346
    %v513 = vpack.c.b16 %v349, %v347
    %v514 = vpack.c.b16 %v352, %v350
    %v515 = vpack.c.b16 %v353, %v351
    %v516 = vpack.c.b16 %v356, %v354
    %v517 = vpack.c.b16 %v357, %v355
    %v518 = vpack.c.b16 %v360, %v358
    %v519 = vpack.c.b16 %v361, %v359
    %v520 = vpack.c.b16 %v364, %v362
    %v521 = vpack.c.b16 %v365, %v363
    %v522 = vpack.c.b16 %v368, %v366
    %v523 = vpack.c.b16 %v369, %v367
    %v524 = vpack.c.b16 %v372, %v370
    %v525 = vpack.c.b16 %v373, %v371
    %v526 = vpack.c.b16 %v376, %v374
    %v527 = vpack.c.b16 %v377, %v375
    %v528 = vpack.c.b16 %v380, %v378
    %v529 = vpack.c.b16 %v381, %v379
    %v530 = vpack.c.b16 %v384, %v382
    %v531 = vpack.c.b16 %v385, %v383
    %v532 = vpack.c.b16 %v388, %v386
    %v533 = vpack.c.b16 %v389, %v387
    %v534 = vpack.c.b16 %v392, %v390
    %v535 = vpack.c.b16 %v393, %v391
    %v536 = vpack.c.b16 %v396, %v394
    %v537 = vpack.c.b16 %v397, %v395
    %v538 = vpack.c.b16 %v400, %v398
    %v539 = vpack.c.b16 %v401, %v399
    %v540 = vpack.c.b16 %v404, %v402
    %v541 = vpack.c.b16 %v405, %v403
    %v542 = vpack.c.b16 %v408, %v406
    %v543 = vpack.c.b16 %v409, %v407
    %v544 = vpack.c.b16 %v412, %v410
    %v545 = vpack.c.b16 %v413, %v411
    %v546 = vpack.c.b16 %v416, %v414
    %v547 = vpack.c.b16 %v417, %v415
    %v548 = vpack.c.b16 %v420, %v418
    %v549 = vpack.c.b16 %v421, %v419
    %v550 = vpack.c.b16 %v424, %v422
    %v551 = vpack.c.b16 %v425, %v423
    %v552 = vpack.c.b16 %v428, %v426
    %v553 = vpack.c.b16 %v429, %v427
    %v554 = vpack.c.b16 %v432, %v430
    %v555 = vpack.c.b16 %v433, %v431
    %v556 = vpack.c.b16 %v436, %v434
    %v557 = vpack.c.b16 %v437, %v435
    %v558 = vpack.c.b16 %v440, %v438
    %v559 = vpack.c.b16 %v441, %v439
    %v560 = vpack.c.b16 %v444, %v442
    %v561 = vpack.c.b16 %v445, %v443
    %v562 = vpack.c.b16 %v448, %v446
    %v563 = vpack.c.b16 %v449, %v447
    %v564 = vpack.c.b16 %v452, %v450
    %v565 = vpack.c.b16 %v453, %v451
    %v566 = vpack.c.b16 %v456, %v454
    %v567 = vpack.c.b16 %v457, %v455
    %v568 = vpack.c.b16 %v460, %v458
    %v569 = vpack.c.b16 %v461, %v459
    %v570 = vpack.c.b16 %v464, %v462
    %v571 = vpack.c.b16 %v465, %v463
    %v572 = vpack.c.b16 %v468, %v466
    %v573 = vpack.c.b16 %v469, %v467
    %v574 = vpack.c.b16 %v472, %v470
    %v575 = vpack.c.b16 %v473, %v471
    %v576 = vpack.c.b16 %v476, %v474
    %v577 = vpack.c.b16 %v477, %v475
    %v578 = vpack.c.b16 %v480, %v478
    %v579 = vpack.c.b16 %v481, %v479
    %v580 = vpack.c.b16 %v484, %v482
    %v581 = vpack.c.b16 %v485, %v483
    %678 = vmatprep.subr.bf16.mxu0 %v501
    %679 = vmatpush1.bf16.msra.mxu0 %v500
    %680 = vmatprep.subr.bf16.mxu0 %v499
    %681 = vmatpush1.bf16.msra.mxu0 %v498
    %682 = vmatprep.subr.bf16.mxu0 %v497
    %683 = vmatpush1.bf16.msra.mxu0 %v496
    %684 = vmatprep.subr.bf16.mxu0 %v495
    %685 = vmatpush1.bf16.msra.mxu0 %v494
    %686 = vmatprep.subr.bf16.mxu0 %v493
    %687 = vmatpush1.bf16.msra.mxu0 %v492
    %688 = vmatprep.subr.bf16.mxu0 %v491
    %689 = vmatpush1.bf16.msra.mxu0 %v490
    %690 = vmatprep.subr.bf16.mxu0 %v489
    %691 = vmatpush1.bf16.msra.mxu0 %v488
    %692 = vmatprep.subr.bf16.mxu0 %v487
    %693 = vmatpush1.bf16.msra.mxu0 %v486
    %694 = vmatprep.subr.bf16.mxu0 %v517
    %695 = vmatpush2.bf16.msra.mxu0 %v516
    %696 = vmatprep.subr.bf16.mxu0 %v515
    %697 = vmatpush2.bf16.msra.mxu0 %v514
    %698 = vmatprep.subr.bf16.mxu0 %v513
    %699 = vmatpush2.bf16.msra.mxu0 %v512
    %700 = vmatprep.subr.bf16.mxu0 %v511
    %701 = vmatpush2.bf16.msra.mxu0 %v510
    %702 = vmatprep.subr.bf16.mxu0 %v509
    %703 = vmatpush2.bf16.msra.mxu0 %v508
    %704 = vmatprep.subr.bf16.mxu0 %v507
    %705 = vmatpush2.bf16.msra.mxu0 %v506
    %706 = vmatprep.subr.bf16.mxu0 %v505
    %707 = vmatpush2.bf16.msra.mxu0 %v504
    %708 = vmatprep.subr.bf16.mxu0 %v503
    %709 = vmatpush2.bf16.msra.mxu0 %v502
    %710 = vmatprep.mubr.bf16.mxu0 %v187
    %711 = vmatmul.mubr.bf16.gmra.mxu0 %v186
    %v712 = vpop.f32.mrf.mxu0
    %v713 = vadd.f32 %v167, %v712
    %v714 = vpop.f32.mrf.mxu0
    %v715 = vadd.f32 %v167, %v714
    %v716 = vpop.f32.mrf.mxu0
    %v717 = vadd.f32 %v167, %v716
    %v718 = vpop.f32.mrf.mxu0
    %v719 = vadd.f32 %v167, %v718
    %720 = vdwg.mxu0
    %721 = vmatprep.subr.bf16.mxu0 %v533
    %722 = vmatpush1.bf16.msra.mxu0 %v532
    %723 = vmatprep.subr.bf16.mxu0 %v531
    %724 = vmatpush1.bf16.msra.mxu0 %v530
    %725 = vmatprep.subr.bf16.mxu0 %v529
    %726 = vmatpush1.bf16.msra.mxu0 %v528
    %727 = vmatprep.subr.bf16.mxu0 %v527
    %728 = vmatpush1.bf16.msra.mxu0 %v526
    %729 = vmatprep.subr.bf16.mxu0 %v525
    %730 = vmatpush1.bf16.msra.mxu0 %v524
    %731 = vmatprep.subr.bf16.mxu0 %v523
    %732 = vmatpush1.bf16.msra.mxu0 %v522
    %733 = vmatprep.subr.bf16.mxu0 %v521
    %734 = vmatpush1.bf16.msra.mxu0 %v520
    %735 = vmatprep.subr.bf16.mxu0 %v519
    %736 = vmatpush1.bf16.msra.mxu0 %v518
    %737 = vmatprep.subr.bf16.mxu0 %v549
    %738 = vmatpush2.bf16.msra.mxu0 %v548
    %739 = vmatprep.subr.bf16.mxu0 %v547
    %740 = vmatpush2.bf16.msra.mxu0 %v546
    %741 = vmatprep.subr.bf16.mxu0 %v545
    %742 = vmatpush2.bf16.msra.mxu0 %v544
    %743 = vmatprep.subr.bf16.mxu0 %v543
    %744 = vmatpush2.bf16.msra.mxu0 %v542
    %745 = vmatprep.subr.bf16.mxu0 %v541
    %746 = vmatpush2.bf16.msra.mxu0 %v540
    %747 = vmatprep.subr.bf16.mxu0 %v539
    %748 = vmatpush2.bf16.msra.mxu0 %v538
    %749 = vmatprep.subr.bf16.mxu0 %v537
    %750 = vmatpush2.bf16.msra.mxu0 %v536
    %751 = vmatprep.subr.bf16.mxu0 %v535
    %752 = vmatpush2.bf16.msra.mxu0 %v534
    %753 = vmatprep.mubr.bf16.mxu0 %v189
    %754 = vmatmul.mubr.bf16.gmra.mxu0 %v188
    %v755 = vpop.f32.mrf.mxu0
    %v756 = vadd.f32 %v713, %v755
    %v757 = vpop.f32.mrf.mxu0
    %v758 = vadd.f32 %v715, %v757
    %v759 = vpop.f32.mrf.mxu0
    %v760 = vadd.f32 %v717, %v759
    %v761 = vpop.f32.mrf.mxu0
    %v762 = vadd.f32 %v719, %v761
    %763 = vdwg.mxu0
    %764 = vmatprep.subr.bf16.mxu0 %v565
    %765 = vmatpush1.bf16.msra.mxu0 %v564
    %766 = vmatprep.subr.bf16.mxu0 %v563
    %767 = vmatpush1.bf16.msra.mxu0 %v562
    %768 = vmatprep.subr.bf16.mxu0 %v561
    %769 = vmatpush1.bf16.msra.mxu0 %v560
    %770 = vmatprep.subr.bf16.mxu0 %v559
    %771 = vmatpush1.bf16.msra.mxu0 %v558
    %772 = vmatprep.subr.bf16.mxu0 %v557
    %773 = vmatpush1.bf16.msra.mxu0 %v556
    %774 = vmatprep.subr.bf16.mxu0 %v555
    %775 = vmatpush1.bf16.msra.mxu0 %v554
    %776 = vmatprep.subr.bf16.mxu0 %v553
    %777 = vmatpush1.bf16.msra.mxu0 %v552
    %778 = vmatprep.subr.bf16.mxu0 %v551
    %779 = vmatpush1.bf16.msra.mxu0 %v550
    %780 = vmatprep.subr.bf16.mxu0 %v581
    %781 = vmatpush2.bf16.msra.mxu0 %v580
    %782 = vmatprep.subr.bf16.mxu0 %v579
    %783 = vmatpush2.bf16.msra.mxu0 %v578
    %784 = vmatprep.subr.bf16.mxu0 %v577
    %785 = vmatpush2.bf16.msra.mxu0 %v576
    %786 = vmatprep.subr.bf16.mxu0 %v575
    %787 = vmatpush2.bf16.msra.mxu0 %v574
    %788 = vmatprep.subr.bf16.mxu0 %v573
    %789 = vmatpush2.bf16.msra.mxu0 %v572
    %790 = vmatprep.subr.bf16.mxu0 %v571
    %791 = vmatpush2.bf16.msra.mxu0 %v570
    %792 = vmatprep.subr.bf16.mxu0 %v569
    %793 = vmatpush2.bf16.msra.mxu0 %v568
    %794 = vmatprep.subr.bf16.mxu0 %v567
    %795 = vmatpush2.bf16.msra.mxu0 %v566
    %796 = vmatprep.mubr.bf16.mxu0 %v191
    %797 = vmatmul.mubr.bf16.gmra.mxu0 %v190
    %v798 = vpop.f32.mrf.mxu0
    %v799 = vadd.f32 %v756, %v798
    %v800 = vpop.f32.mrf.mxu0
    %v801 = vadd.f32 %v758, %v800
    %v802 = vpop.f32.mrf.mxu0
    %v803 = vadd.f32 %v760, %v802
    %v804 = vpop.f32.mrf.mxu0
    %v805 = vadd.f32 %v762, %v804
    %806 = vdwg.mxu0
    %v807 = vmax.f32 %v799, 0.0
    %v808 = vmax.f32 %v801, 0.0
    %v809 = vmax.f32 %v803, 0.0
    %v810 = vmax.f32 %v805, 0.0
    %v811 = vpack.c.bf16 %v809, %v807
    %v812 = vpack.c.bf16 %v810, %v808
    %v813 = vld [vmem:[#allocation8] sm:$0xf]
    %v814 = vld [vmem:[#allocation8 + $0x4] sm:$0xf]
    %v815 = vld [vmem:[#allocation8 + $0x8] sm:$0xf]
    %v816 = vld [vmem:[#allocation8 + $0xc] sm:$0xf]
    %v817 = vld [vmem:[#allocation8 + $0x10] sm:$0xf]
    %v818 = vld [vmem:[#allocation8 + $0x14] sm:$0xf]
    %v819 = vld [vmem:[#allocation8 + $0x18] sm:$0xf]
    %v820 = vld [vmem:[#allocation8 + $0x1c] sm:$0xf]
    %v821 = vld [vmem:[#allocation8 + $0x20] sm:$0xf]
    %v822 = vld [vmem:[#allocation8 + $0x24] sm:$0xf]
    %v823 = vld [vmem:[#allocation8 + $0x28] sm:$0xf]
    %v824 = vld [vmem:[#allocation8 + $0x2c] sm:$0xf]
    %v825 = vld [vmem:[#allocation8 + $0x30] sm:$0xf]
    %v826 = vld [vmem:[#allocation8 + $0x34] sm:$0xf]
    %v827 = vld [vmem:[#allocation8 + $0x38] sm:$0xf]
    %v828 = vld [vmem:[#allocation8 + $0x3c] sm:$0xf]
    %v829 = vld [vmem:[#allocation8 + $0x40] sm:$0xf]
    %v830 = vld [vmem:[#allocation8 + $0x44] sm:$0xf]
    %v831 = vld [vmem:[#allocation8 + $0x48] sm:$0xf]
    %v832 = vld [vmem:[#allocation8 + $0x4c] sm:$0xf]
    %v833 = vld [vmem:[#allocation8 + $0x50] sm:$0xf]
    %v834 = vld [vmem:[#allocation8 + $0x54] sm:$0xf]
    %v835 = vld [vmem:[#allocation8 + $0x58] sm:$0xf]
    %v836 = vld [vmem:[#allocation8 + $0x5c] sm:$0xf]
    %v837 = vld [vmem:[#allocation8 + $0x60] sm:$0xf]
    %v838 = vld [vmem:[#allocation8 + $0x64] sm:$0xf]
    %v839 = vld [vmem:[#allocation8 + $0x68] sm:$0xf]
    %v840 = vld [vmem:[#allocation8 + $0x6c] sm:$0xf]
    %v841 = vld [vmem:[#allocation8 + $0x70] sm:$0xf]
    %v842 = vld [vmem:[#allocation8 + $0x74] sm:$0xf]
    %v843 = vld [vmem:[#allocation8 + $0x78] sm:$0xf]
    %v844 = vld [vmem:[#allocation8 + $0x7c] sm:$0xf]
    %v845 = vld [vmem:[%s4] sm:$0x1]
    %v847 = vlaneseq
    %v848 = vshrl.u32 %v847, 7
    %v849 = vsub.s32 0, %v848
    %v850 = vrot.slane %v845, %v849
    %v884 = vunpack.c.l.b16 %v813
    %v885 = vunpack.c.l.b16 %v814
    %v886 = vunpack.c.l.b16 %v815
    %v887 = vunpack.c.l.b16 %v816
    %v888 = vunpack.c.l.b16 %v817
    %v889 = vunpack.c.l.b16 %v818
    %v890 = vunpack.c.l.b16 %v819
    %v891 = vunpack.c.l.b16 %v820
    %v892 = vunpack.c.l.b16 %v821
    %v893 = vunpack.c.l.b16 %v822
    %v894 = vunpack.c.l.b16 %v823
    %v895 = vunpack.c.l.b16 %v824
    %v896 = vunpack.c.l.b16 %v825
    %v897 = vunpack.c.l.b16 %v826
    %v898 = vunpack.c.l.b16 %v827
    %v899 = vunpack.c.l.b16 %v828
    %v900 = vunpack.c.l.b16 %v829
    %v901 = vunpack.c.l.b16 %v830
    %v902 = vunpack.c.l.b16 %v831
    %v903 = vunpack.c.l.b16 %v832
    %v904 = vunpack.c.l.b16 %v833
    %v905 = vunpack.c.l.b16 %v834
    %v906 = vunpack.c.l.b16 %v835
    %v907 = vunpack.c.l.b16 %v836
    %v908 = vunpack.c.l.b16 %v837
    %v909 = vunpack.c.l.b16 %v838
    %v910 = vunpack.c.l.b16 %v839
    %v911 = vunpack.c.l.b16 %v840
    %v912 = vunpack.c.l.b16 %v841
    %v913 = vunpack.c.l.b16 %v842
    %v914 = vunpack.c.l.b16 %v843
    %v915 = vunpack.c.l.b16 %v844
    %v916 = vpack.c.b16 %v885, %v884
    %v917 = vpack.c.b16 %v887, %v886
    %v918 = vpack.c.b16 %v889, %v888
    %v919 = vpack.c.b16 %v891, %v890
    %v920 = vpack.c.b16 %v893, %v892
    %v921 = vpack.c.b16 %v895, %v894
    %v922 = vpack.c.b16 %v897, %v896
    %v923 = vpack.c.b16 %v899, %v898
    %v924 = vpack.c.b16 %v901, %v900
    %v925 = vpack.c.b16 %v903, %v902
    %v926 = vpack.c.b16 %v905, %v904
    %v927 = vpack.c.b16 %v907, %v906
    %v928 = vpack.c.b16 %v909, %v908
    %v929 = vpack.c.b16 %v911, %v910
    %v930 = vpack.c.b16 %v913, %v912
    %v931 = vpack.c.b16 %v915, %v914
    %948 = vmatprep.subr.bf16.mxu0 0
    %949 = vmatpush1.bf16.msra.mxu0 %v923
    %950 = vmatprep.subr.bf16.mxu0 0
    %951 = vmatpush1.bf16.msra.mxu0 %v922
    %952 = vmatprep.subr.bf16.mxu0 0
    %953 = vmatpush1.bf16.msra.mxu0 %v921
    %954 = vmatprep.subr.bf16.mxu0 0
    %955 = vmatpush1.bf16.msra.mxu0 %v920
    %956 = vmatprep.subr.bf16.mxu0 0
    %957 = vmatpush1.bf16.msra.mxu0 %v919
    %958 = vmatprep.subr.bf16.mxu0 0
    %959 = vmatpush1.bf16.msra.mxu0 %v918
    %960 = vmatprep.subr.bf16.mxu0 0
    %961 = vmatpush1.bf16.msra.mxu0 %v917
    %962 = vmatprep.subr.bf16.mxu0 0
    %963 = vmatpush1.bf16.msra.mxu0 %v916
    %964 = vmatprep.subr.bf16.mxu0 0
    %965 = vmatpush2.bf16.msra.mxu0 %v931
    %966 = vmatprep.subr.bf16.mxu0 0
    %967 = vmatpush2.bf16.msra.mxu0 %v930
    %968 = vmatprep.subr.bf16.mxu0 0
    %969 = vmatpush2.bf16.msra.mxu0 %v929
    %970 = vmatprep.subr.bf16.mxu0 0
    %971 = vmatpush2.bf16.msra.mxu0 %v928
    %972 = vmatprep.subr.bf16.mxu0 0
    %973 = vmatpush2.bf16.msra.mxu0 %v927
    %974 = vmatprep.subr.bf16.mxu0 0
    %975 = vmatpush2.bf16.msra.mxu0 %v926
    %976 = vmatprep.subr.bf16.mxu0 0
    %977 = vmatpush2.bf16.msra.mxu0 %v925
    %978 = vmatprep.subr.bf16.mxu0 0
    %979 = vmatpush2.bf16.msra.mxu0 %v924
    %980 = vmatprep.mubr.bf16.mxu0 %v812
    %981 = vmatmul.mubr.bf16.gmra.mxu0 %v811
    %v982 = vpop.f32.mrf.mxu0
    %v983 = vadd.f32 %v850, %v982
    %v984 = vpop.f32.mrf.mxu0
    %v985 = vpop.f32.mrf.mxu0
    %v986 = vadd.f32 %v850, %v985
    %v987 = vpop.f32.mrf.mxu0
    %988 = vdwg.mxu0
    %989 = vst [vmem:[#allocation9] sm:$0xff] %v983
    %990 = vst [vmem:[#allocation9 + $0x8] sm:$0xff] %v986
    // Predicated region
    $region34: #{tpu_custom_call.1} parent=1 // pred_check
      _
    $region35: #{tpu_custom_call.1} parent=1 // pred_check_branch
      %992 = sbr.rel (0) target = $region37
    $region36: #{tpu_custom_call.1} parent=1 // pred_region
      %s994 = ssub.s32 256, 256
      %995 = vsyncadd [#allocation5], %s994
      %s996 = sshll.u32 [#allocation9], 4
      %s997 = int_to_ptr.vmem [resolvable:$true] %s996
      %1002 = dma.vmem_to_hbm [thread:$0]  %s997, 256, %s5, [#allocation5], 128, 128, 8
    $region37: #{tpu_custom_call.1} parent=1 // pred_fallthru
      _
    // Predicated region
    $region38: #{tpu_custom_call.1} parent=1 // pred_check
      _
    $region39: #{tpu_custom_call.1} parent=1 // pred_check_branch
      %1004 = sbr.rel (0) target = $region41
    $region40: #{tpu_custom_call.1} parent=1 // pred_region
      %1005 = dma.done [#allocation5], 256
    $region41: #{tpu_custom_call.1} parent=1 // pred_fallthru
      _
    %1006 = vsyncpa [#allocation4], 1
    %1007 = vsyncpa [#allocation7], 1
    %1008 = vsyncpa [#allocation5], 1

</llo_original>
